<compile_context>
chip_gen: v5e
topology: v5e:2x2
jax: 0.10.0
libtpu: 0.0.40
codegen_flags: <defaults>
</compile_context>

<pallas_src>
import numpy as np
import jax
import jax.numpy as jnp
from jax.experimental import pallas as pl
from jax.experimental.pallas import tpu as pltpu

KSIZE = 11
PAD = 5            # (KSIZE - 1) // 2 -> "same" padding
STD = 3.0
MAX_PLANES_PER_STEP = 16   # cap on the unrolled per-plane vertical matmul loop


def _gaussian_1d(size=KSIZE, std=STD):
    """1D factor of the normalized 2D Gaussian: outer(w, w) == outer(g, g)/outer(g, g).sum()."""
    n = np.arange(size, dtype=np.float64) - (size - 1) / 2.0
    g = np.exp(-(n ** 2) / (2.0 * std ** 2))
    return g / g.sum()


def _band_matrix(n):
    """(n, n) banded matrix M[i, j] = w1d[j - i + PAD] for |j - i| <= PAD, else 0.

    Truncated boundary rows reproduce zero padding exactly:
        (M @ X)[i, :] == sum_k w1d[k + PAD] * Xpad[i + k, :]
        (X @ M)[:, j] == sum_k w1d[k + PAD] * Xpad[:, j + k]
    (M is symmetric because the Gaussian taps are symmetric.)
    """
    w1 = _gaussian_1d()
    m = np.zeros((n, n), dtype=np.float64)
    for d in range(-PAD, PAD + 1):
        i = np.arange(max(0, -d), min(n, n - d))
        m[i, i + d] = w1[d + PAD]
    return m.astype(np.float32)


def _make_blur_kernel(p, h, w):
    hi = jax.lax.Precision.HIGHEST

    def _blur_kernel(av_ref, ah_ref, x_ref, o_ref):
        # av_ref: (h, h) f32 banded Gaussian (vertical pass)
        # ah_ref: (w, w) f32 banded Gaussian (horizontal pass)
        # x_ref : (p, h, w) input planes
        # o_ref : (p, h, w) blurred output planes
        av = av_ref[...]
        ah = ah_ref[...]
        x = x_ref[...].astype(jnp.float32)

        # Horizontal pass for all p planes at once: one (p*h, w) @ (w, w) MXU matmul.
        yh = jnp.dot(
            x.reshape(p * h, w), ah,
            precision=hi, preferred_element_type=jnp.float32,
        ).reshape(p, h, w)

        # Vertical pass: per-plane (h, h) @ (h, w) MXU matmuls (p is small, unrolled).
        for i in range(p):
            o_ref[i] = jnp.dot(
                av, yh[i],
                precision=hi, preferred_element_type=jnp.float32,
            ).astype(o_ref.dtype)

    return _blur_kernel


def _vmem_budget_and_limit():
    """(block budget, vmem_limit_bytes) — generation aware (v7x has 64 MiB vs 128 MiB)."""
    try:
        cap = int(pltpu.get_tpu_info().vmem_capacity_bytes)
    except Exception:
        cap = 64 << 20
    budget = min(cap // 2, 48 << 20)
    limit = min(budget + (16 << 20), max(cap - (8 << 20), 32 << 20))
    return budget, limit


def _cores_per_chip():
    """2 TensorCores on v7x, 1 on v5e/v6e (grid is a serial loop on single-TC chips)."""
    try:
        kind = jax.devices()[0].device_kind.lower()
    except Exception:
        return 1
    return 2 if ("v7" in kind or "tpu7" in kind) else 1


def _pick_plane_tile(n, h, w, itemsize, budget):
    """Largest plane count per grid step that fits the VMEM budget.

    Accounts for double-buffered input AND output blocks plus both (resident) band
    matrices and f32 intermediates.  On 2-TC chips, prefer an even number of grid
    steps so both TensorCores get equal work; on single-TC chips a grid of 1 is best.
    """
    band_bytes = 2 * 4 * (h * h + w * w)

    def fits(p):
        io = 2 * p * h * w * itemsize * 2     # double-buffered in + out blocks
        tmp = 2 * p * h * w * 4               # f32 intermediates / headroom
        return band_bytes + io + tmp <= budget

    max_p = min(n, MAX_PLANES_PER_STEP)
    divs = [d for d in range(1, max_p + 1) if n % d == 0]
    ok = [d for d in divs if fits(d)] or [1]
    if _cores_per_chip() >= 2:
        even = [d for d in ok if (n // d) % 2 == 0]
        if even:
            return max(even)
    return max(ok)


def gaussian_blur(x):
    """x: float tensor [b, 3, h, w] -> blurred [b, 3, h, w] (depthwise 11x11, std=3, pad=5)."""
    b, c, h, w = x.shape
    assert c == 3, "GaussianBlur expects RGB input with 3 channels"
    n = b * c
    budget, vmem_limit = _vmem_budget_and_limit()
    p = _pick_plane_tile(n, h, w, x.dtype.itemsize, budget)

    a_v = jnp.asarray(_band_matrix(h))     # (h, h)
    a_h = jnp.asarray(_band_matrix(w))     # (w, w)
    x_flat = x.reshape(n, h, w)            # no wrapper-side padding / transposes

    out_flat = pl.pallas_call(
        _make_blur_kernel(p, h, w),
        out_shape=jax.ShapeDtypeStruct((n, h, w), x.dtype),
        grid_spec=pltpu.PrefetchScalarGridSpec(
            num_scalar_prefetch=0,
            grid=(n // p,),
            in_specs=[
                pl.BlockSpec((h, h), lambda i: (0, 0)),        # A_v (resident)
                pl.BlockSpec((w, w), lambda i: (0, 0)),        # A_h (resident)
                pl.BlockSpec((p, h, w), lambda i: (i, 0, 0)),  # input planes
            ],
            out_specs=pl.BlockSpec((p, h, w), lambda i: (i, 0, 0)),
        ),
        compiler_params=pltpu.CompilerParams(
            dimension_semantics=("parallel",),
            vmem_limit_bytes=int(vmem_limit),
        ),
    )(a_v, a_h, x_flat)

    return out_flat.reshape(b, c, h, w)


def _reference_blur(x):
    """Pure-JAX depthwise conv reference (matches F.conv2d(..., padding=5, groups=3))."""
    w1d = _gaussian_1d()
    k2d = np.outer(w1d, w1d).astype(np.float32)
    wts = jnp.broadcast_to(jnp.asarray(k2d)[None, None], (3, 1, KSIZE, KSIZE))
    return jax.lax.conv_general_dilated(
        x, wts,
        window_strides=(1, 1),
        padding=((PAD, PAD), (PAD, PAD)),
        dimension_numbers=("NCHW", "OIHW", "NCHW"),
        feature_group_count=3,
        precision=jax.lax.Precision.HIGHEST,
    )


if __name__ == "__main__":
    key = jax.random.PRNGKey(0)
    b, c, h, w = 2, 3, 16, 16
    x = jax.random.uniform(key, (b, c, h, w), dtype=jnp.float32)  # pixel values in [0, 1]

    out = jax.block_until_ready(gaussian_blur(x))
    ref = jax.block_until_ready(_reference_blur(x))

    assert out.shape == (b, c, h, w)
    assert jnp.max(jnp.abs(out - ref)) < 1e-5

    print("KERNEL_OK")
</pallas_src>

<mosaic_0001>
module attributes {stable_mosaic.version = 11 : i64} {
  func.func @_blur_kernel(%arg0: i32, %arg1: memref<16x16xf32, #tpu.memory_space<vmem>>, %arg2: memref<16x16xf32, #tpu.memory_space<vmem>>, %arg3: memref<6x16x16xf32, #tpu.memory_space<vmem>>, %arg4: memref<6x16x16xf32, #tpu.memory_space<vmem>>) attributes {dimension_semantics = [#tpu.dimension_semantics<parallel>], iteration_bounds = array<i64: 1>, scalar_prefetch = 0 : i64, scratch_operands = 0 : i64, tpu.core_type = #tpu.core_type<tc>, window_params = [{pipeline_mode = #tpu.pipeline_mode<synchronous>, transform_indices = @transform_0, window_bounds = array<i64: 16, 16>}, {pipeline_mode = #tpu.pipeline_mode<synchronous>, transform_indices = @transform_1, window_bounds = array<i64: 16, 16>}, {transform_indices = @transform_2, window_bounds = array<i64: 6, 16, 16>}, {transform_indices = @transform_3, window_bounds = array<i64: 6, 16, 16>}]} {
    %c0 = arith.constant 0 : index
    %c0_0 = arith.constant 0 : index
    %0 = vector.load %arg1[%c0, %c0_0] : memref<16x16xf32, #tpu.memory_space<vmem>>, vector<16x16xf32>
    %c0_1 = arith.constant 0 : index
    %c0_2 = arith.constant 0 : index
    %1 = vector.load %arg2[%c0_1, %c0_2] : memref<16x16xf32, #tpu.memory_space<vmem>>, vector<16x16xf32>
    %c0_3 = arith.constant 0 : index
    %c0_4 = arith.constant 0 : index
    %c0_5 = arith.constant 0 : index
    %2 = vector.load %arg3[%c0_3, %c0_4, %c0_5] : memref<6x16x16xf32, #tpu.memory_space<vmem>>, vector<6x16x16xf32>
    %3 = vector.shape_cast %2 : vector<6x16x16xf32> to vector<96x16xf32>
    %cst = arith.constant dense<0.000000e+00> : vector<96x16xf32>
    %4 = tpu.matmul %3, %1, %cst {dimension_numbers = #tpu.dot_dimension_numbers<[1], [0], [0], [1], [0, 0, 1, 1], [], []>, precision = #tpu.contract_precision<fp32>} : vector<96x16xf32>, vector<16x16xf32>, vector<96x16xf32> -> vector<96x16xf32>
    %5 = vector.shape_cast %4 : vector<96x16xf32> to vector<6x16x16xf32>
    %6 = vector.extract_strided_slice %5 {offsets = [0, 0, 0], sizes = [1, 16, 16], strides = [1, 1, 1]} : vector<6x16x16xf32> to vector<1x16x16xf32>
    %7 = vector.shape_cast %6 : vector<1x16x16xf32> to vector<16x16xf32>
    %cst_6 = arith.constant dense<0.000000e+00> : vector<16x16xf32>
    %8 = tpu.matmul %0, %7, %cst_6 {dimension_numbers = #tpu.dot_dimension_numbers<[1], [0], [0], [1], [0, 0, 1, 1], [], []>, precision = #tpu.contract_precision<fp32>} : vector<16x16xf32>, vector<16x16xf32>, vector<16x16xf32> -> vector<16x16xf32>
    %c0_7 = arith.constant 0 : index
    %c0_8 = arith.constant 0 : index
    %c0_9 = arith.constant 0 : index
    %9 = vector.load %arg4[%c0_7, %c0_8, %c0_9] : memref<6x16x16xf32, #tpu.memory_space<vmem>>, vector<1x16x16xf32>
    %10 = vector.shape_cast %9 : vector<1x16x16xf32> to vector<16x16xf32>
    %11 = vector.shape_cast %8 : vector<16x16xf32> to vector<1x16x16xf32>
    tpu.vector_store %arg4[%c0_7, %c0_8, %c0_9], %11 {strides = array<i32>} : memref<6x16x16xf32, #tpu.memory_space<vmem>>, vector<1x16x16xf32>,
    %12 = vector.extract_strided_slice %5 {offsets = [1, 0, 0], sizes = [1, 16, 16], strides = [1, 1, 1]} : vector<6x16x16xf32> to vector<1x16x16xf32>
    %13 = vector.shape_cast %12 : vector<1x16x16xf32> to vector<16x16xf32>
    %cst_10 = arith.constant dense<0.000000e+00> : vector<16x16xf32>
    %14 = tpu.matmul %0, %13, %cst_10 {dimension_numbers = #tpu.dot_dimension_numbers<[1], [0], [0], [1], [0, 0, 1, 1], [], []>, precision = #tpu.contract_precision<fp32>} : vector<16x16xf32>, vector<16x16xf32>, vector<16x16xf32> -> vector<16x16xf32>
    %c1 = arith.constant 1 : index
    %c0_11 = arith.constant 0 : index
    %c0_12 = arith.constant 0 : index
    %15 = vector.load %arg4[%c1, %c0_11, %c0_12] : memref<6x16x16xf32, #tpu.memory_space<vmem>>, vector<1x16x16xf32>
    %16 = vector.shape_cast %15 : vector<1x16x16xf32> to vector<16x16xf32>
    %17 = vector.shape_cast %14 : vector<16x16xf32> to vector<1x16x16xf32>
    tpu.vector_store %arg4[%c1, %c0_11, %c0_12], %17 {strides = array<i32>} : memref<6x16x16xf32, #tpu.memory_space<vmem>>, vector<1x16x16xf32>,
    %18 = vector.extract_strided_slice %5 {offsets = [2, 0, 0], sizes = [1, 16, 16], strides = [1, 1, 1]} : vector<6x16x16xf32> to vector<1x16x16xf32>
    %19 = vector.shape_cast %18 : vector<1x16x16xf32> to vector<16x16xf32>
    %cst_13 = arith.constant dense<0.000000e+00> : vector<16x16xf32>
    %20 = tpu.matmul %0, %19, %cst_13 {dimension_numbers = #tpu.dot_dimension_numbers<[1], [0], [0], [1], [0, 0, 1, 1], [], []>, precision = #tpu.contract_precision<fp32>} : vector<16x16xf32>, vector<16x16xf32>, vector<16x16xf32> -> vector<16x16xf32>
    %c2 = arith.constant 2 : index
    %c0_14 = arith.constant 0 : index
    %c0_15 = arith.constant 0 : index
    %21 = vector.load %arg4[%c2, %c0_14, %c0_15] : memref<6x16x16xf32, #tpu.memory_space<vmem>>, vector<1x16x16xf32>
    %22 = vector.shape_cast %21 : vector<1x16x16xf32> to vector<16x16xf32>
    %23 = vector.shape_cast %20 : vector<16x16xf32> to vector<1x16x16xf32>
    tpu.vector_store %arg4[%c2, %c0_14, %c0_15], %23 {strides = array<i32>} : memref<6x16x16xf32, #tpu.memory_space<vmem>>, vector<1x16x16xf32>,
    %24 = vector.extract_strided_slice %5 {offsets = [3, 0, 0], sizes = [1, 16, 16], strides = [1, 1, 1]} : vector<6x16x16xf32> to vector<1x16x16xf32>
    %25 = vector.shape_cast %24 : vector<1x16x16xf32> to vector<16x16xf32>
    %cst_16 = arith.constant dense<0.000000e+00> : vector<16x16xf32>
    %26 = tpu.matmul %0, %25, %cst_16 {dimension_numbers = #tpu.dot_dimension_numbers<[1], [0], [0], [1], [0, 0, 1, 1], [], []>, precision = #tpu.contract_precision<fp32>} : vector<16x16xf32>, vector<16x16xf32>, vector<16x16xf32> -> vector<16x16xf32>
    %c3 = arith.constant 3 : index
    %c0_17 = arith.constant 0 : index
    %c0_18 = arith.constant 0 : index
    %27 = vector.load %arg4[%c3, %c0_17, %c0_18] : memref<6x16x16xf32, #tpu.memory_space<vmem>>, vector<1x16x16xf32>
    %28 = vector.shape_cast %27 : vector<1x16x16xf32> to vector<16x16xf32>
    %29 = vector.shape_cast %26 : vector<16x16xf32> to vector<1x16x16xf32>
    tpu.vector_store %arg4[%c3, %c0_17, %c0_18], %29 {strides = array<i32>} : memref<6x16x16xf32, #tpu.memory_space<vmem>>, vector<1x16x16xf32>,
    %30 = vector.extract_strided_slice %5 {offsets = [4, 0, 0], sizes = [1, 16, 16], strides = [1, 1, 1]} : vector<6x16x16xf32> to vector<1x16x16xf32>
    %31 = vector.shape_cast %30 : vector<1x16x16xf32> to vector<16x16xf32>
    %cst_19 = arith.constant dense<0.000000e+00> : vector<16x16xf32>
    %32 = tpu.matmul %0, %31, %cst_19 {dimension_numbers = #tpu.dot_dimension_numbers<[1], [0], [0], [1], [0, 0, 1, 1], [], []>, precision = #tpu.contract_precision<fp32>} : vector<16x16xf32>, vector<16x16xf32>, vector<16x16xf32> -> vector<16x16xf32>
    %c4 = arith.constant 4 : index
    %c0_20 = arith.constant 0 : index
    %c0_21 = arith.constant 0 : index
    %33 = vector.load %arg4[%c4, %c0_20, %c0_21] : memref<6x16x16xf32, #tpu.memory_space<vmem>>, vector<1x16x16xf32>
    %34 = vector.shape_cast %33 : vector<1x16x16xf32> to vector<16x16xf32>
    %35 = vector.shape_cast %32 : vector<16x16xf32> to vector<1x16x16xf32>
    tpu.vector_store %arg4[%c4, %c0_20, %c0_21], %35 {strides = array<i32>} : memref<6x16x16xf32, #tpu.memory_space<vmem>>, vector<1x16x16xf32>,
    %36 = vector.extract_strided_slice %5 {offsets = [5, 0, 0], sizes = [1, 16, 16], strides = [1, 1, 1]} : vector<6x16x16xf32> to vector<1x16x16xf32>
    %37 = vector.shape_cast %36 : vector<1x16x16xf32> to vector<16x16xf32>
    %cst_22 = arith.constant dense<0.000000e+00> : vector<16x16xf32>
    %38 = tpu.matmul %0, %37, %cst_22 {dimension_numbers = #tpu.dot_dimension_numbers<[1], [0], [0], [1], [0, 0, 1, 1], [], []>, precision = #tpu.contract_precision<fp32>} : vector<16x16xf32>, vector<16x16xf32>, vector<16x16xf32> -> vector<16x16xf32>
    %c5 = arith.constant 5 : index
    %c0_23 = arith.constant 0 : index
    %c0_24 = arith.constant 0 : index
    %39 = vector.load %arg4[%c5, %c0_23, %c0_24] : memref<6x16x16xf32, #tpu.memory_space<vmem>>, vector<1x16x16xf32>
    %40 = vector.shape_cast %39 : vector<1x16x16xf32> to vector<16x16xf32>
    %41 = vector.shape_cast %38 : vector<16x16xf32> to vector<1x16x16xf32>
    tpu.vector_store %arg4[%c5, %c0_23, %c0_24], %41 {strides = array<i32>} : memref<6x16x16xf32, #tpu.memory_space<vmem>>, vector<1x16x16xf32>,
    return
  }
  func.func @transform_0(%arg0: i32) -> (i32, i32) {
    %c0_i32 = arith.constant 0 : i32
    %c0_i32_0 = arith.constant 0 : i32
    %c0_i32_1 = arith.constant 0 : i32
    return %c0_i32, %c0_i32_0 : i32, i32
  }
  func.func @transform_1(%arg0: i32) -> (i32, i32) {
    %c0_i32 = arith.constant 0 : i32
    %c0_i32_0 = arith.constant 0 : i32
    %c0_i32_1 = arith.constant 0 : i32
    return %c0_i32, %c0_i32_0 : i32, i32
  }
  func.func @transform_2(%arg0: i32) -> (i32, i32, i32) {
    %c0_i32 = arith.constant 0 : i32
    %c0_i32_0 = arith.constant 0 : i32
    %c0_i32_1 = arith.constant 0 : i32
    return %arg0, %c0_i32, %c0_i32_0 : i32, i32, i32
  }
  func.func @transform_3(%arg0: i32) -> (i32, i32, i32) {
    %c0_i32 = arith.constant 0 : i32
    %c0_i32_0 = arith.constant 0 : i32
    %c0_i32_1 = arith.constant 0 : i32
    return %arg0, %c0_i32, %c0_i32_0 : i32, i32, i32
  }
}

</mosaic_0001>

<llo_original>
// kernel: tpu_custom_call.1
$region0: #{tpu_custom_call.1}
  #allocation0 [shape = 'u32[]', space=smem, size = 0x4, offset = 0x4, fixed_abs, tag = 'smem constant byte address 0x4 - core index']
  #allocation1 [shape = 'u32[72,128]{1,0:T(1,128)}', space=vmem, size = 0x9000, scoped, tag = 'internal scratch']
  %s0 = inlined_call_operand.hbm [shape: f32[16,16], index: 0, kind: input, shape index: {}]
  %s1 = inlined_call_operand.hbm [shape: f32[16,16], index: 1, kind: input, shape index: {}]
  %s2 = inlined_call_operand.hbm [shape: f32[6,16,16], index: 2, kind: input, shape index: {}]
  %s3 = inlined_call_operand.hbm [shape: f32[6,16,16], index: 3, kind: output, shape index: {}]
  %s4 = sld [smem:[#allocation0]]
  $region34: #{tpu_custom_call.1} parent=0
    _
  %s6 = ssub.s32 1, %s4
  %s7 = scalar_select 0, %s6, %s4
  $region1: #{tpu_custom_call.1} parent=0
    #allocation2 [shape = 'u8[8192]{0}', space=vmem, size = 0x2000, scoped, tag = 'input window, operand 0, single buffered']
    #allocation3 [shape = 's32[1]{0}', space=sflag, size = 0x4, scoped, tag = 'scoped memory for tpu_custom_call.1']
    #allocation4 [shape = 's32[1]{0}', space=sflag, size = 0x4, scoped, tag = 'scoped memory for tpu_custom_call.1']
    #allocation5 [shape = 'u8[8192]{0}', space=vmem, size = 0x2000, scoped, tag = 'input window, operand 1, single buffered']
    #allocation6 [shape = 's32[1]{0}', space=sflag, size = 0x4, scoped, tag = 'scoped memory for tpu_custom_call.1']
    #allocation7 [shape = 'u8[49152]{0}', space=vmem, size = 0xc000, scoped, tag = 'input window, operand 2, single buffered']
    #allocation8 [shape = 'u8[49152]{0}', space=vmem, size = 0xc000, scoped, tag = 'output window, operand 0, single buffered']
    %8 = vsyncpa [#allocation3], 0
    %9 = vsyncpa [#allocation6], 0
    %10 = vsyncpa [#allocation4], 0
    // Predicated region
    $region2: #{tpu_custom_call.1} parent=1 // pred_check
      _
    $region3: #{tpu_custom_call.1} parent=1 // pred_check_branch
      %12 = sbr.rel (0) target = $region5
    $region4: #{tpu_custom_call.1} parent=1 // pred_region
      %14 = vsyncadd [#allocation3], 0
      %s15 = sshll.u32 %s0, 4
      %s16 = int_to_ptr.hbm [resolvable:$true] %s15
      %s17 = sshll.u32 [#allocation2], 4
      %s18 = int_to_ptr.vmem [resolvable:$true] %s17
      %23 = dma.hbm_to_vmem [thread:$0]  %s16, 256, %s18, [#allocation3], 128, 128, 8
    $region5: #{tpu_custom_call.1} parent=1 // pred_fallthru
      _
    // Predicated region
    $region6: #{tpu_custom_call.1} parent=1 // pred_check
      _
    $region7: #{tpu_custom_call.1} parent=1 // pred_check_branch
      %25 = sbr.rel (0) target = $region9
    $region8: #{tpu_custom_call.1} parent=1 // pred_region
      %27 = vsyncadd [#allocation6], 0
      %s28 = sshll.u32 %s1, 4
      %s29 = int_to_ptr.hbm [resolvable:$true] %s28
      %s30 = sshll.u32 [#allocation5], 4
      %s31 = int_to_ptr.vmem [resolvable:$true] %s30
      %36 = dma.hbm_to_vmem [thread:$0]  %s29, 256, %s31, [#allocation6], 128, 128, 8
    $region9: #{tpu_custom_call.1} parent=1 // pred_fallthru
      _
    // Predicated region
    $region10: #{tpu_custom_call.1} parent=1 // pred_check
      _
    $region11: #{tpu_custom_call.1} parent=1 // pred_check_branch
      %38 = sbr.rel (0) target = $region13
    $region12: #{tpu_custom_call.1} parent=1 // pred_region
      %40 = vsyncadd [#allocation6], 0
      %s41 = sshll.u32 %s2, 4
      %s42 = int_to_ptr.hbm [resolvable:$true] %s41
      %s43 = sshll.u32 [#allocation7], 4
      %s44 = int_to_ptr.vmem [resolvable:$true] %s43
      %49 = dma.hbm_to_vmem [thread:$0]  %s42, 1536, %s44, [#allocation6], 128, 128, 8
    $region13: #{tpu_custom_call.1} parent=1 // pred_fallthru
      _
    // Predicated region
    $region14: #{tpu_custom_call.1} parent=1 // pred_check
      _
    $region15: #{tpu_custom_call.1} parent=1 // pred_check_branch
      %51 = sbr.rel (0) target = $region17
    $region16: #{tpu_custom_call.1} parent=1 // pred_region
      %53 = dma.done [#allocation3], 256
    $region17: #{tpu_custom_call.1} parent=1 // pred_fallthru
      _
    // Predicated region
    $region18: #{tpu_custom_call.1} parent=1 // pred_check
      _
    $region19: #{tpu_custom_call.1} parent=1 // pred_check_branch
      %55 = sbr.rel (0) target = $region21
    $region20: #{tpu_custom_call.1} parent=1 // pred_region
      %57 = dma.done [#allocation6], 256
    $region21: #{tpu_custom_call.1} parent=1 // pred_fallthru
      _
    // Predicated region
    $region22: #{tpu_custom_call.1} parent=1 // pred_check
      _
    $region23: #{tpu_custom_call.1} parent=1 // pred_check_branch
      %59 = sbr.rel (0) target = $region25
    $region24: #{tpu_custom_call.1} parent=1 // pred_region
      %61 = dma.done [#allocation6], 1536
    $region25: #{tpu_custom_call.1} parent=1 // pred_fallthru
      _
    %v62 = vld [vmem:[#allocation2] sm:$0xff]
    %v63 = vld [vmem:[#allocation2 + $0x8] sm:$0xff]
    %v64 = vld [vmem:[#allocation5] sm:$0xff]
    %v65 = vld [vmem:[#allocation5 + $0x8] sm:$0xff]
    %v66 = vld [vmem:[#allocation7] sm:$0xff]
    %v67 = vld [vmem:[#allocation7 + $0x8] sm:$0xff]
    %v68 = vld [vmem:[#allocation7 + $0x10] sm:$0xff]
    %v69 = vld [vmem:[#allocation7 + $0x18] sm:$0xff]
    %v70 = vld [vmem:[#allocation7 + $0x20] sm:$0xff]
    %v71 = vld [vmem:[#allocation7 + $0x28] sm:$0xff]
    %v72 = vld [vmem:[#allocation7 + $0x30] sm:$0xff]
    %v73 = vld [vmem:[#allocation7 + $0x38] sm:$0xff]
    %v74 = vld [vmem:[#allocation7 + $0x40] sm:$0xff]
    %v75 = vld [vmem:[#allocation7 + $0x48] sm:$0xff]
    %v76 = vld [vmem:[#allocation7 + $0x50] sm:$0xff]
    %v77 = vld [vmem:[#allocation7 + $0x58] sm:$0xff]
    %vm78 = vcmask 130048
    %v80 = vsel %vm78, %v66, 0
    %v83 = vsel %vm78, %v67, 0
    %v86 = vsel %vm78, %v68, 0
    %v89 = vsel %vm78, %v69, 0
    %v92 = vsel %vm78, %v70, 0
    %v95 = vsel %vm78, %v71, 0
    %v98 = vsel %vm78, %v72, 0
    %v101 = vsel %vm78, %v73, 0
    %v104 = vsel %vm78, %v74, 0
    %v107 = vsel %vm78, %v75, 0
    %v110 = vsel %vm78, %v76, 0
    %v113 = vsel %vm78, %v77, 0
    %115 = vmatpush.msra.mxu0 0.0
    %116 = vmatpush.msra.mxu0 0.0
    %117 = vmatpush.msra.mxu0 0.0
    %118 = vmatpush.msra.mxu0 0.0
    %119 = vmatpush.msra.mxu0 0.0
    %120 = vmatpush.msra.mxu0 0.0
    %121 = vmatpush.msra.mxu0 0.0
    %122 = vmatpush.msra.mxu0 0.0
    %123 = vmatpush.msra.mxu0 0.0
    %124 = vmatpush.msra.mxu0 0.0
    %125 = vmatpush.msra.mxu0 0.0
    %126 = vmatpush.msra.mxu0 0.0
    %127 = vmatpush.msra.mxu0 0.0
    %128 = vmatpush.msra.mxu0 0.0
    %v129 = vand.u32 %v65, 4294901760
    %130 = vmatpush.msra.mxu0 %v129
    %v131 = vand.u32 %v64, 4294901760
    %132 = vmatpush.msra.mxu0 %v131
    %v133 = vand.u32 %v80, 4294901760
    %v134 = vsub.f32 %v80, %v133
    %v135 = vand.u32 %v134, 4294901760
    %v136 = vsub.f32 %v134, %v135
    %v137 = vand.u32 %v136, 4294901760
    %138 = vmatmul.f32.gmra.mxu0 %v137
    %v139 = vpop.f32.mrf.mxu0
    %v140 = vadd.f32 0.0, %v139
    %v141 = vand.u32 %v83, 4294901760
    %v142 = vsub.f32 %v83, %v141
    %v143 = vand.u32 %v142, 4294901760
    %v144 = vsub.f32 %v142, %v143
    %v145 = vand.u32 %v144, 4294901760
    %146 = vmatmul.f32.gmra.mxu0 %v145
    %v147 = vpop.f32.mrf.mxu0
    %v148 = vadd.f32 0.0, %v147
    %v149 = vand.u32 %v86, 4294901760
    %v150 = vsub.f32 %v86, %v149
    %v151 = vand.u32 %v150, 4294901760
    %v152 = vsub.f32 %v150, %v151
    %v153 = vand.u32 %v152, 4294901760
    %154 = vmatmul.f32.gmra.mxu0 %v153
    %v155 = vpop.f32.mrf.mxu0
    %v156 = vadd.f32 0.0, %v155
    %v157 = vand.u32 %v89, 4294901760
    %v158 = vsub.f32 %v89, %v157
    %v159 = vand.u32 %v158, 4294901760
    %v160 = vsub.f32 %v158, %v159
    %v161 = vand.u32 %v160, 4294901760
    %162 = vmatmul.f32.gmra.mxu0 %v161
    %v163 = vpop.f32.mrf.mxu0
    %v164 = vadd.f32 0.0, %v163
    %v165 = vand.u32 %v92, 4294901760
    %v166 = vsub.f32 %v92, %v165
    %v167 = vand.u32 %v166, 4294901760
    %v168 = vsub.f32 %v166, %v167
    %v169 = vand.u32 %v168, 4294901760
    %170 = vmatmul.f32.gmra.mxu0 %v169
    %v171 = vpop.f32.mrf.mxu0
    %v172 = vadd.f32 0.0, %v171
    %v173 = vand.u32 %v95, 4294901760
    %v174 = vsub.f32 %v95, %v173
    %v175 = vand.u32 %v174, 4294901760
    %v176 = vsub.f32 %v174, %v175
    %v177 = vand.u32 %v176, 4294901760
    %178 = vmatmul.f32.gmra.mxu0 %v177
    %v179 = vpop.f32.mrf.mxu0
    %v180 = vadd.f32 0.0, %v179
    %v181 = vand.u32 %v98, 4294901760
    %v182 = vsub.f32 %v98, %v181
    %v183 = vand.u32 %v182, 4294901760
    %v184 = vsub.f32 %v182, %v183
    %v185 = vand.u32 %v184, 4294901760
    %186 = vmatmul.f32.gmra.mxu0 %v185
    %v187 = vpop.f32.mrf.mxu0
    %v188 = vadd.f32 0.0, %v187
    %v189 = vand.u32 %v101, 4294901760
    %v190 = vsub.f32 %v101, %v189
    %v191 = vand.u32 %v190, 4294901760
    %v192 = vsub.f32 %v190, %v191
    %v193 = vand.u32 %v192, 4294901760
    %194 = vmatmul.f32.gmra.mxu0 %v193
    %v195 = vpop.f32.mrf.mxu0
    %v196 = vadd.f32 0.0, %v195
    %v197 = vand.u32 %v104, 4294901760
    %v198 = vsub.f32 %v104, %v197
    %v199 = vand.u32 %v198, 4294901760
    %v200 = vsub.f32 %v198, %v199
    %v201 = vand.u32 %v200, 4294901760
    %202 = vmatmul.f32.gmra.mxu0 %v201
    %v203 = vpop.f32.mrf.mxu0
    %v204 = vadd.f32 0.0, %v203
    %v205 = vand.u32 %v107, 4294901760
    %v206 = vsub.f32 %v107, %v205
    %v207 = vand.u32 %v206, 4294901760
    %v208 = vsub.f32 %v206, %v207
    %v209 = vand.u32 %v208, 4294901760
    %210 = vmatmul.f32.gmra.mxu0 %v209
    %v211 = vpop.f32.mrf.mxu0
    %v212 = vadd.f32 0.0, %v211
    %v213 = vand.u32 %v110, 4294901760
    %v214 = vsub.f32 %v110, %v213
    %v215 = vand.u32 %v214, 4294901760
    %v216 = vsub.f32 %v214, %v215
    %v217 = vand.u32 %v216, 4294901760
    %218 = vmatmul.f32.gmra.mxu0 %v217
    %v219 = vpop.f32.mrf.mxu0
    %v220 = vadd.f32 0.0, %v219
    %v221 = vand.u32 %v113, 4294901760
    %v222 = vsub.f32 %v113, %v221
    %v223 = vand.u32 %v222, 4294901760
    %v224 = vsub.f32 %v222, %v223
    %v225 = vand.u32 %v224, 4294901760
    %226 = vmatmul.f32.gmra.mxu0 %v225
    %v227 = vpop.f32.mrf.mxu0
    %v228 = vadd.f32 0.0, %v227
    %229 = vdwg.mxu0
    %230 = vmatpush.msra.mxu0 0.0
    %231 = vmatpush.msra.mxu0 0.0
    %232 = vmatpush.msra.mxu0 0.0
    %233 = vmatpush.msra.mxu0 0.0
    %234 = vmatpush.msra.mxu0 0.0
    %235 = vmatpush.msra.mxu0 0.0
    %236 = vmatpush.msra.mxu0 0.0
    %237 = vmatpush.msra.mxu0 0.0
    %238 = vmatpush.msra.mxu0 0.0
    %239 = vmatpush.msra.mxu0 0.0
    %240 = vmatpush.msra.mxu0 0.0
    %241 = vmatpush.msra.mxu0 0.0
    %242 = vmatpush.msra.mxu0 0.0
    %243 = vmatpush.msra.mxu0 0.0
    %v244 = vand.u32 %v65, 4294901760
    %v245 = vsub.f32 %v65, %v244
    %v246 = vand.u32 %v245, 4294901760
    %v247 = vsub.f32 %v245, %v246
    %v248 = vand.u32 %v247, 4294901760
    %249 = vmatpush.msra.mxu0 %v248
    %v250 = vand.u32 %v64, 4294901760
    %v251 = vsub.f32 %v64, %v250
    %v252 = vand.u32 %v251, 4294901760
    %v253 = vsub.f32 %v251, %v252
    %v254 = vand.u32 %v253, 4294901760
    %255 = vmatpush.msra.mxu0 %v254
    %v256 = vand.u32 %v80, 4294901760
    %257 = vmatmul.f32.gmra.mxu0 %v256
    %v258 = vpop.f32.mrf.mxu0
    %v259 = vadd.f32 %v140, %v258
    %v260 = vand.u32 %v83, 4294901760
    %261 = vmatmul.f32.gmra.mxu0 %v260
    %v262 = vpop.f32.mrf.mxu0
    %v263 = vadd.f32 %v148, %v262
    %v264 = vand.u32 %v86, 4294901760
    %265 = vmatmul.f32.gmra.mxu0 %v264
    %v266 = vpop.f32.mrf.mxu0
    %v267 = vadd.f32 %v156, %v266
    %v268 = vand.u32 %v89, 4294901760
    %269 = vmatmul.f32.gmra.mxu0 %v268
    %v270 = vpop.f32.mrf.mxu0
    %v271 = vadd.f32 %v164, %v270
    %v272 = vand.u32 %v92, 4294901760
    %273 = vmatmul.f32.gmra.mxu0 %v272
    %v274 = vpop.f32.mrf.mxu0
    %v275 = vadd.f32 %v172, %v274
    %v276 = vand.u32 %v95, 4294901760
    %277 = vmatmul.f32.gmra.mxu0 %v276
    %v278 = vpop.f32.mrf.mxu0
    %v279 = vadd.f32 %v180, %v278
    %v280 = vand.u32 %v98, 4294901760
    %281 = vmatmul.f32.gmra.mxu0 %v280
    %v282 = vpop.f32.mrf.mxu0
    %v283 = vadd.f32 %v188, %v282
    %v284 = vand.u32 %v101, 4294901760
    %285 = vmatmul.f32.gmra.mxu0 %v284
    %v286 = vpop.f32.mrf.mxu0
    %v287 = vadd.f32 %v196, %v286
    %v288 = vand.u32 %v104, 4294901760
    %289 = vmatmul.f32.gmra.mxu0 %v288
    %v290 = vpop.f32.mrf.mxu0
    %v291 = vadd.f32 %v204, %v290
    %v292 = vand.u32 %v107, 4294901760
    %293 = vmatmul.f32.gmra.mxu0 %v292
    %v294 = vpop.f32.mrf.mxu0
    %v295 = vadd.f32 %v212, %v294
    %v296 = vand.u32 %v110, 4294901760
    %297 = vmatmul.f32.gmra.mxu0 %v296
    %v298 = vpop.f32.mrf.mxu0
    %v299 = vadd.f32 %v220, %v298
    %v300 = vand.u32 %v113, 4294901760
    %301 = vmatmul.f32.gmra.mxu0 %v300
    %v302 = vpop.f32.mrf.mxu0
    %v303 = vadd.f32 %v228, %v302
    %304 = vdwg.mxu0
    %305 = vmatpush.msra.mxu0 0.0
    %306 = vmatpush.msra.mxu0 0.0
    %307 = vmatpush.msra.mxu0 0.0
    %308 = vmatpush.msra.mxu0 0.0
    %309 = vmatpush.msra.mxu0 0.0
    %310 = vmatpush.msra.mxu0 0.0
    %311 = vmatpush.msra.mxu0 0.0
    %312 = vmatpush.msra.mxu0 0.0
    %313 = vmatpush.msra.mxu0 0.0
    %314 = vmatpush.msra.mxu0 0.0
    %315 = vmatpush.msra.mxu0 0.0
    %316 = vmatpush.msra.mxu0 0.0
    %317 = vmatpush.msra.mxu0 0.0
    %318 = vmatpush.msra.mxu0 0.0
    %v319 = vand.u32 %v65, 4294901760
    %v320 = vsub.f32 %v65, %v319
    %321 = vmatpush.msra.mxu0 %v320
    %v322 = vand.u32 %v64, 4294901760
    %v323 = vsub.f32 %v64, %v322
    %324 = vmatpush.msra.mxu0 %v323
    %v325 = vand.u32 %v80, 4294901760
    %v326 = vsub.f32 %v80, %v325
    %327 = vmatmul.f32.gmra.mxu0 %v326
    %v328 = vpop.f32.mrf.mxu0
    %v329 = vadd.f32 %v259, %v328
    %v330 = vand.u32 %v83, 4294901760
    %v331 = vsub.f32 %v83, %v330
    %332 = vmatmul.f32.gmra.mxu0 %v331
    %v333 = vpop.f32.mrf.mxu0
    %v334 = vadd.f32 %v263, %v333
    %v335 = vand.u32 %v86, 4294901760
    %v336 = vsub.f32 %v86, %v335
    %337 = vmatmul.f32.gmra.mxu0 %v336
    %v338 = vpop.f32.mrf.mxu0
    %v339 = vadd.f32 %v267, %v338
    %v340 = vand.u32 %v89, 4294901760
    %v341 = vsub.f32 %v89, %v340
    %342 = vmatmul.f32.gmra.mxu0 %v341
    %v343 = vpop.f32.mrf.mxu0
    %v344 = vadd.f32 %v271, %v343
    %v345 = vand.u32 %v92, 4294901760
    %v346 = vsub.f32 %v92, %v345
    %347 = vmatmul.f32.gmra.mxu0 %v346
    %v348 = vpop.f32.mrf.mxu0
    %v349 = vadd.f32 %v275, %v348
    %v350 = vand.u32 %v95, 4294901760
    %v351 = vsub.f32 %v95, %v350
    %352 = vmatmul.f32.gmra.mxu0 %v351
    %v353 = vpop.f32.mrf.mxu0
    %v354 = vadd.f32 %v279, %v353
    %v355 = vand.u32 %v98, 4294901760
    %v356 = vsub.f32 %v98, %v355
    %357 = vmatmul.f32.gmra.mxu0 %v356
    %v358 = vpop.f32.mrf.mxu0
    %v359 = vadd.f32 %v283, %v358
    %v360 = vand.u32 %v101, 4294901760
    %v361 = vsub.f32 %v101, %v360
    %362 = vmatmul.f32.gmra.mxu0 %v361
    %v363 = vpop.f32.mrf.mxu0
    %v364 = vadd.f32 %v287, %v363
    %v365 = vand.u32 %v104, 4294901760
    %v366 = vsub.f32 %v104, %v365
    %367 = vmatmul.f32.gmra.mxu0 %v366
    %v368 = vpop.f32.mrf.mxu0
    %v369 = vadd.f32 %v291, %v368
    %v370 = vand.u32 %v107, 4294901760
    %v371 = vsub.f32 %v107, %v370
    %372 = vmatmul.f32.gmra.mxu0 %v371
    %v373 = vpop.f32.mrf.mxu0
    %v374 = vadd.f32 %v295, %v373
    %v375 = vand.u32 %v110, 4294901760
    %v376 = vsub.f32 %v110, %v375
    %377 = vmatmul.f32.gmra.mxu0 %v376
    %v378 = vpop.f32.mrf.mxu0
    %v379 = vadd.f32 %v299, %v378
    %v380 = vand.u32 %v113, 4294901760
    %v381 = vsub.f32 %v113, %v380
    %382 = vmatmul.f32.gmra.mxu0 %v381
    %v383 = vpop.f32.mrf.mxu0
    %v384 = vadd.f32 %v303, %v383
    %385 = vdwg.mxu0
    %386 = vmatpush.msra.mxu0 0.0
    %387 = vmatpush.msra.mxu0 0.0
    %388 = vmatpush.msra.mxu0 0.0
    %389 = vmatpush.msra.mxu0 0.0
    %390 = vmatpush.msra.mxu0 0.0
    %391 = vmatpush.msra.mxu0 0.0
    %392 = vmatpush.msra.mxu0 0.0
    %393 = vmatpush.msra.mxu0 0.0
    %394 = vmatpush.msra.mxu0 0.0
    %395 = vmatpush.msra.mxu0 0.0
    %396 = vmatpush.msra.mxu0 0.0
    %397 = vmatpush.msra.mxu0 0.0
    %398 = vmatpush.msra.mxu0 0.0
    %399 = vmatpush.msra.mxu0 0.0
    %v400 = vand.u32 %v65, 4294901760
    %401 = vmatpush.msra.mxu0 %v400
    %v402 = vand.u32 %v64, 4294901760
    %403 = vmatpush.msra.mxu0 %v402
    %v404 = vand.u32 %v80, 4294901760
    %v405 = vsub.f32 %v80, %v404
    %v406 = vand.u32 %v405, 4294901760
    %407 = vmatmul.f32.gmra.mxu0 %v406
    %v408 = vpop.f32.mrf.mxu0
    %v409 = vadd.f32 %v329, %v408
    %v410 = vand.u32 %v83, 4294901760
    %v411 = vsub.f32 %v83, %v410
    %v412 = vand.u32 %v411, 4294901760
    %413 = vmatmul.f32.gmra.mxu0 %v412
    %v414 = vpop.f32.mrf.mxu0
    %v415 = vadd.f32 %v334, %v414
    %v416 = vand.u32 %v86, 4294901760
    %v417 = vsub.f32 %v86, %v416
    %v418 = vand.u32 %v417, 4294901760
    %419 = vmatmul.f32.gmra.mxu0 %v418
    %v420 = vpop.f32.mrf.mxu0
    %v421 = vadd.f32 %v339, %v420
    %v422 = vand.u32 %v89, 4294901760
    %v423 = vsub.f32 %v89, %v422
    %v424 = vand.u32 %v423, 4294901760
    %425 = vmatmul.f32.gmra.mxu0 %v424
    %v426 = vpop.f32.mrf.mxu0
    %v427 = vadd.f32 %v344, %v426
    %v428 = vand.u32 %v92, 4294901760
    %v429 = vsub.f32 %v92, %v428
    %v430 = vand.u32 %v429, 4294901760
    %431 = vmatmul.f32.gmra.mxu0 %v430
    %v432 = vpop.f32.mrf.mxu0
    %v433 = vadd.f32 %v349, %v432
    %v434 = vand.u32 %v95, 4294901760
    %v435 = vsub.f32 %v95, %v434
    %v436 = vand.u32 %v435, 4294901760
    %437 = vmatmul.f32.gmra.mxu0 %v436
    %v438 = vpop.f32.mrf.mxu0
    %v439 = vadd.f32 %v354, %v438
    %v440 = vand.u32 %v98, 4294901760
    %v441 = vsub.f32 %v98, %v440
    %v442 = vand.u32 %v441, 4294901760
    %443 = vmatmul.f32.gmra.mxu0 %v442
    %v444 = vpop.f32.mrf.mxu0
    %v445 = vadd.f32 %v359, %v444
    %v446 = vand.u32 %v101, 4294901760
    %v447 = vsub.f32 %v101, %v446
    %v448 = vand.u32 %v447, 4294901760
    %449 = vmatmul.f32.gmra.mxu0 %v448
    %v450 = vpop.f32.mrf.mxu0
    %v451 = vadd.f32 %v364, %v450
    %v452 = vand.u32 %v104, 4294901760
    %v453 = vsub.f32 %v104, %v452
    %v454 = vand.u32 %v453, 4294901760
    %455 = vmatmul.f32.gmra.mxu0 %v454
    %v456 = vpop.f32.mrf.mxu0
    %v457 = vadd.f32 %v369, %v456
    %v458 = vand.u32 %v107, 4294901760
    %v459 = vsub.f32 %v107, %v458
    %v460 = vand.u32 %v459, 4294901760
    %461 = vmatmul.f32.gmra.mxu0 %v460
    %v462 = vpop.f32.mrf.mxu0
    %v463 = vadd.f32 %v374, %v462
    %v464 = vand.u32 %v110, 4294901760
    %v465 = vsub.f32 %v110, %v464
    %v466 = vand.u32 %v465, 4294901760
    %467 = vmatmul.f32.gmra.mxu0 %v466
    %v468 = vpop.f32.mrf.mxu0
    %v469 = vadd.f32 %v379, %v468
    %v470 = vand.u32 %v113, 4294901760
    %v471 = vsub.f32 %v113, %v470
    %v472 = vand.u32 %v471, 4294901760
    %473 = vmatmul.f32.gmra.mxu0 %v472
    %v474 = vpop.f32.mrf.mxu0
    %v475 = vadd.f32 %v384, %v474
    %476 = vdwg.mxu0
    %477 = vmatpush.msra.mxu0 0.0
    %478 = vmatpush.msra.mxu0 0.0
    %479 = vmatpush.msra.mxu0 0.0
    %480 = vmatpush.msra.mxu0 0.0
    %481 = vmatpush.msra.mxu0 0.0
    %482 = vmatpush.msra.mxu0 0.0
    %483 = vmatpush.msra.mxu0 0.0
    %484 = vmatpush.msra.mxu0 0.0
    %485 = vmatpush.msra.mxu0 0.0
    %486 = vmatpush.msra.mxu0 0.0
    %487 = vmatpush.msra.mxu0 0.0
    %488 = vmatpush.msra.mxu0 0.0
    %489 = vmatpush.msra.mxu0 0.0
    %490 = vmatpush.msra.mxu0 0.0
    %v491 = vand.u32 %v65, 4294901760
    %v492 = vsub.f32 %v65, %v491
    %v493 = vand.u32 %v492, 4294901760
    %494 = vmatpush.msra.mxu0 %v493
    %v495 = vand.u32 %v64, 4294901760
    %v496 = vsub.f32 %v64, %v495
    %v497 = vand.u32 %v496, 4294901760
    %498 = vmatpush.msra.mxu0 %v497
    %v499 = vand.u32 %v80, 4294901760
    %500 = vmatmul.f32.gmra.mxu0 %v499
    %v501 = vpop.f32.mrf.mxu0
    %v502 = vadd.f32 %v409, %v501
    %v503 = vand.u32 %v83, 4294901760
    %504 = vmatmul.f32.gmra.mxu0 %v503
    %v505 = vpop.f32.mrf.mxu0
    %v506 = vadd.f32 %v415, %v505
    %v507 = vand.u32 %v86, 4294901760
    %508 = vmatmul.f32.gmra.mxu0 %v507
    %v509 = vpop.f32.mrf.mxu0
    %v510 = vadd.f32 %v421, %v509
    %v511 = vand.u32 %v89, 4294901760
    %512 = vmatmul.f32.gmra.mxu0 %v511
    %v513 = vpop.f32.mrf.mxu0
    %v514 = vadd.f32 %v427, %v513
    %v515 = vand.u32 %v92, 4294901760
    %516 = vmatmul.f32.gmra.mxu0 %v515
    %v517 = vpop.f32.mrf.mxu0
    %v518 = vadd.f32 %v433, %v517
    %v519 = vand.u32 %v95, 4294901760
    %520 = vmatmul.f32.gmra.mxu0 %v519
    %v521 = vpop.f32.mrf.mxu0
    %v522 = vadd.f32 %v439, %v521
    %v523 = vand.u32 %v98, 4294901760
    %524 = vmatmul.f32.gmra.mxu0 %v523
    %v525 = vpop.f32.mrf.mxu0
    %v526 = vadd.f32 %v445, %v525
    %v527 = vand.u32 %v101, 4294901760
    %528 = vmatmul.f32.gmra.mxu0 %v527
    %v529 = vpop.f32.mrf.mxu0
    %v530 = vadd.f32 %v451, %v529
    %v531 = vand.u32 %v104, 4294901760
    %532 = vmatmul.f32.gmra.mxu0 %v531
    %v533 = vpop.f32.mrf.mxu0
    %v534 = vadd.f32 %v457, %v533
    %v535 = vand.u32 %v107, 4294901760
    %536 = vmatmul.f32.gmra.mxu0 %v535
    %v537 = vpop.f32.mrf.mxu0
    %v538 = vadd.f32 %v463, %v537
    %v539 = vand.u32 %v110, 4294901760
    %540 = vmatmul.f32.gmra.mxu0 %v539
    %v541 = vpop.f32.mrf.mxu0
    %v542 = vadd.f32 %v469, %v541
    %v543 = vand.u32 %v113, 4294901760
    %544 = vmatmul.f32.gmra.mxu0 %v543
    %v545 = vpop.f32.mrf.mxu0
    %v546 = vadd.f32 %v475, %v545
    %547 = vdwg.mxu0
    %548 = vmatpush.msra.mxu0 0.0
    %549 = vmatpush.msra.mxu0 0.0
    %550 = vmatpush.msra.mxu0 0.0
    %551 = vmatpush.msra.mxu0 0.0
    %552 = vmatpush.msra.mxu0 0.0
    %553 = vmatpush.msra.mxu0 0.0
    %554 = vmatpush.msra.mxu0 0.0
    %555 = vmatpush.msra.mxu0 0.0
    %556 = vmatpush.msra.mxu0 0.0
    %557 = vmatpush.msra.mxu0 0.0
    %558 = vmatpush.msra.mxu0 0.0
    %559 = vmatpush.msra.mxu0 0.0
    %560 = vmatpush.msra.mxu0 0.0
    %561 = vmatpush.msra.mxu0 0.0
    %v562 = vand.u32 %v65, 4294901760
    %563 = vmatpush.msra.mxu0 %v562
    %v564 = vand.u32 %v64, 4294901760
    %565 = vmatpush.msra.mxu0 %v564
    %v566 = vand.u32 %v80, 4294901760
    %567 = vmatmul.f32.gmra.mxu0 %v566
    %v568 = vpop.f32.mrf.mxu0
    %v569 = vadd.f32 %v502, %v568
    %v570 = vand.u32 %v83, 4294901760
    %571 = vmatmul.f32.gmra.mxu0 %v570
    %v572 = vpop.f32.mrf.mxu0
    %v573 = vadd.f32 %v506, %v572
    %v574 = vand.u32 %v86, 4294901760
    %575 = vmatmul.f32.gmra.mxu0 %v574
    %v576 = vpop.f32.mrf.mxu0
    %v577 = vadd.f32 %v510, %v576
    %v578 = vand.u32 %v89, 4294901760
    %579 = vmatmul.f32.gmra.mxu0 %v578
    %v580 = vpop.f32.mrf.mxu0
    %v581 = vadd.f32 %v514, %v580
    %v582 = vand.u32 %v92, 4294901760
    %583 = vmatmul.f32.gmra.mxu0 %v582
    %v584 = vpop.f32.mrf.mxu0
    %v585 = vadd.f32 %v518, %v584
    %v586 = vand.u32 %v95, 4294901760
    %587 = vmatmul.f32.gmra.mxu0 %v586
    %v588 = vpop.f32.mrf.mxu0
    %v589 = vadd.f32 %v522, %v588
    %v590 = vand.u32 %v98, 4294901760
    %591 = vmatmul.f32.gmra.mxu0 %v590
    %v592 = vpop.f32.mrf.mxu0
    %v593 = vadd.f32 %v526, %v592
    %v594 = vand.u32 %v101, 4294901760
    %595 = vmatmul.f32.gmra.mxu0 %v594
    %v596 = vpop.f32.mrf.mxu0
    %v597 = vadd.f32 %v530, %v596
    %v598 = vand.u32 %v104, 4294901760
    %599 = vmatmul.f32.gmra.mxu0 %v598
    %v600 = vpop.f32.mrf.mxu0
    %v601 = vadd.f32 %v534, %v600
    %v602 = vand.u32 %v107, 4294901760
    %603 = vmatmul.f32.gmra.mxu0 %v602
    %v604 = vpop.f32.mrf.mxu0
    %v605 = vadd.f32 %v538, %v604
    %v606 = vand.u32 %v110, 4294901760
    %607 = vmatmul.f32.gmra.mxu0 %v606
    %v608 = vpop.f32.mrf.mxu0
    %v609 = vadd.f32 %v542, %v608
    %v610 = vand.u32 %v113, 4294901760
    %611 = vmatmul.f32.gmra.mxu0 %v610
    %v612 = vpop.f32.mrf.mxu0
    %v613 = vadd.f32 %v546, %v612
    %614 = vdwg.mxu0
    %v616 = vsel %vm78, %v62, 0
    %v619 = vsel %vm78, %v63, 0
    %621 = vmatpush.msra.mxu0 0.0
    %622 = vmatpush.msra.mxu0 0.0
    %623 = vmatpush.msra.mxu0 0.0
    %624 = vmatpush.msra.mxu0 0.0
    %625 = vmatpush.msra.mxu0 0.0
    %626 = vmatpush.msra.mxu0 0.0
    %627 = vmatpush.msra.mxu0 0.0
    %628 = vmatpush.msra.mxu0 0.0
    %629 = vmatpush.msra.mxu0 0.0
    %630 = vmatpush.msra.mxu0 0.0
    %631 = vmatpush.msra.mxu0 0.0
    %632 = vmatpush.msra.mxu0 0.0
    %633 = vmatpush.msra.mxu0 0.0
    %634 = vmatpush.msra.mxu0 0.0
    %v635 = vand.u32 %v573, 4294901760
    %636 = vmatpush.msra.mxu0 %v635
    %v637 = vand.u32 %v569, 4294901760
    %638 = vmatpush.msra.mxu0 %v637
    %v639 = vand.u32 %v616, 4294901760
    %v640 = vsub.f32 %v616, %v639
    %v641 = vand.u32 %v640, 4294901760
    %v642 = vsub.f32 %v640, %v641
    %v643 = vand.u32 %v642, 4294901760
    %644 = vmatmul.f32.gmra.mxu0 %v643
    %v645 = vpop.f32.mrf.mxu0
    %v646 = vadd.f32 0.0, %v645
    %v647 = vand.u32 %v619, 4294901760
    %v648 = vsub.f32 %v619, %v647
    %v649 = vand.u32 %v648, 4294901760
    %v650 = vsub.f32 %v648, %v649
    %v651 = vand.u32 %v650, 4294901760
    %652 = vmatmul.f32.gmra.mxu0 %v651
    %v653 = vpop.f32.mrf.mxu0
    %v654 = vadd.f32 0.0, %v653
    %655 = vdwg.mxu0
    %656 = vmatpush.msra.mxu0 0.0
    %657 = vmatpush.msra.mxu0 0.0
    %658 = vmatpush.msra.mxu0 0.0
    %659 = vmatpush.msra.mxu0 0.0
    %660 = vmatpush.msra.mxu0 0.0
    %661 = vmatpush.msra.mxu0 0.0
    %662 = vmatpush.msra.mxu0 0.0
    %663 = vmatpush.msra.mxu0 0.0
    %664 = vmatpush.msra.mxu0 0.0
    %665 = vmatpush.msra.mxu0 0.0
    %666 = vmatpush.msra.mxu0 0.0
    %667 = vmatpush.msra.mxu0 0.0
    %668 = vmatpush.msra.mxu0 0.0
    %669 = vmatpush.msra.mxu0 0.0
    %v670 = vand.u32 %v573, 4294901760
    %v671 = vsub.f32 %v573, %v670
    %v672 = vand.u32 %v671, 4294901760
    %v673 = vsub.f32 %v671, %v672
    %v674 = vand.u32 %v673, 4294901760
    %675 = vmatpush.msra.mxu0 %v674
    %v676 = vand.u32 %v569, 4294901760
    %v677 = vsub.f32 %v569, %v676
    %v678 = vand.u32 %v677, 4294901760
    %v679 = vsub.f32 %v677, %v678
    %v680 = vand.u32 %v679, 4294901760
    %681 = vmatpush.msra.mxu0 %v680
    %v682 = vand.u32 %v616, 4294901760
    %683 = vmatmul.f32.gmra.mxu0 %v682
    %v684 = vpop.f32.mrf.mxu0
    %v685 = vadd.f32 %v646, %v684
    %v686 = vand.u32 %v619, 4294901760
    %687 = vmatmul.f32.gmra.mxu0 %v686
    %v688 = vpop.f32.mrf.mxu0
    %v689 = vadd.f32 %v654, %v688
    %690 = vdwg.mxu0
    %691 = vmatpush.msra.mxu0 0.0
    %692 = vmatpush.msra.mxu0 0.0
    %693 = vmatpush.msra.mxu0 0.0
    %694 = vmatpush.msra.mxu0 0.0
    %695 = vmatpush.msra.mxu0 0.0
    %696 = vmatpush.msra.mxu0 0.0
    %697 = vmatpush.msra.mxu0 0.0
    %698 = vmatpush.msra.mxu0 0.0
    %699 = vmatpush.msra.mxu0 0.0
    %700 = vmatpush.msra.mxu0 0.0
    %701 = vmatpush.msra.mxu0 0.0
    %702 = vmatpush.msra.mxu0 0.0
    %703 = vmatpush.msra.mxu0 0.0
    %704 = vmatpush.msra.mxu0 0.0
    %v705 = vand.u32 %v573, 4294901760
    %v706 = vsub.f32 %v573, %v705
    %707 = vmatpush.msra.mxu0 %v706
    %v708 = vand.u32 %v569, 4294901760
    %v709 = vsub.f32 %v569, %v708
    %710 = vmatpush.msra.mxu0 %v709
    %v711 = vand.u32 %v616, 4294901760
    %v712 = vsub.f32 %v616, %v711
    %713 = vmatmul.f32.gmra.mxu0 %v712
    %v714 = vpop.f32.mrf.mxu0
    %v715 = vadd.f32 %v685, %v714
    %v716 = vand.u32 %v619, 4294901760
    %v717 = vsub.f32 %v619, %v716
    %718 = vmatmul.f32.gmra.mxu0 %v717
    %v719 = vpop.f32.mrf.mxu0
    %v720 = vadd.f32 %v689, %v719
    %721 = vdwg.mxu0
    %722 = vmatpush.msra.mxu0 0.0
    %723 = vmatpush.msra.mxu0 0.0
    %724 = vmatpush.msra.mxu0 0.0
    %725 = vmatpush.msra.mxu0 0.0
    %726 = vmatpush.msra.mxu0 0.0
    %727 = vmatpush.msra.mxu0 0.0
    %728 = vmatpush.msra.mxu0 0.0
    %729 = vmatpush.msra.mxu0 0.0
    %730 = vmatpush.msra.mxu0 0.0
    %731 = vmatpush.msra.mxu0 0.0
    %732 = vmatpush.msra.mxu0 0.0
    %733 = vmatpush.msra.mxu0 0.0
    %734 = vmatpush.msra.mxu0 0.0
    %735 = vmatpush.msra.mxu0 0.0
    %v736 = vand.u32 %v573, 4294901760
    %737 = vmatpush.msra.mxu0 %v736
    %v738 = vand.u32 %v569, 4294901760
    %739 = vmatpush.msra.mxu0 %v738
    %v740 = vand.u32 %v616, 4294901760
    %v741 = vsub.f32 %v616, %v740
    %v742 = vand.u32 %v741, 4294901760
    %743 = vmatmul.f32.gmra.mxu0 %v742
    %v744 = vpop.f32.mrf.mxu0
    %v745 = vadd.f32 %v715, %v744
    %v746 = vand.u32 %v619, 4294901760
    %v747 = vsub.f32 %v619, %v746
    %v748 = vand.u32 %v747, 4294901760
    %749 = vmatmul.f32.gmra.mxu0 %v748
    %v750 = vpop.f32.mrf.mxu0
    %v751 = vadd.f32 %v720, %v750
    %752 = vdwg.mxu0
    %753 = vmatpush.msra.mxu0 0.0
    %754 = vmatpush.msra.mxu0 0.0
    %755 = vmatpush.msra.mxu0 0.0
    %756 = vmatpush.msra.mxu0 0.0
    %757 = vmatpush.msra.mxu0 0.0
    %758 = vmatpush.msra.mxu0 0.0
    %759 = vmatpush.msra.mxu0 0.0
    %760 = vmatpush.msra.mxu0 0.0
    %761 = vmatpush.msra.mxu0 0.0
    %762 = vmatpush.msra.mxu0 0.0
    %763 = vmatpush.msra.mxu0 0.0
    %764 = vmatpush.msra.mxu0 0.0
    %765 = vmatpush.msra.mxu0 0.0
    %766 = vmatpush.msra.mxu0 0.0
    %v767 = vand.u32 %v573, 4294901760
    %v768 = vsub.f32 %v573, %v767
    %v769 = vand.u32 %v768, 4294901760
    %770 = vmatpush.msra.mxu0 %v769
    %v771 = vand.u32 %v569, 4294901760
    %v772 = vsub.f32 %v569, %v771
    %v773 = vand.u32 %v772, 4294901760
    %774 = vmatpush.msra.mxu0 %v773
    %v775 = vand.u32 %v616, 4294901760
    %776 = vmatmul.f32.gmra.mxu0 %v775
    %v777 = vpop.f32.mrf.mxu0
    %v778 = vadd.f32 %v745, %v777
    %v779 = vand.u32 %v619, 4294901760
    %780 = vmatmul.f32.gmra.mxu0 %v779
    %v781 = vpop.f32.mrf.mxu0
    %v782 = vadd.f32 %v751, %v781
    %783 = vdwg.mxu0
    %784 = vmatpush.msra.mxu0 0.0
    %785 = vmatpush.msra.mxu0 0.0
    %786 = vmatpush.msra.mxu0 0.0
    %787 = vmatpush.msra.mxu0 0.0
    %788 = vmatpush.msra.mxu0 0.0
    %789 = vmatpush.msra.mxu0 0.0
    %790 = vmatpush.msra.mxu0 0.0
    %791 = vmatpush.msra.mxu0 0.0
    %792 = vmatpush.msra.mxu0 0.0
    %793 = vmatpush.msra.mxu0 0.0
    %794 = vmatpush.msra.mxu0 0.0
    %795 = vmatpush.msra.mxu0 0.0
    %796 = vmatpush.msra.mxu0 0.0
    %797 = vmatpush.msra.mxu0 0.0
    %v798 = vand.u32 %v573, 4294901760
    %799 = vmatpush.msra.mxu0 %v798
    %v800 = vand.u32 %v569, 4294901760
    %801 = vmatpush.msra.mxu0 %v800
    %v802 = vand.u32 %v616, 4294901760
    %803 = vmatmul.f32.gmra.mxu0 %v802
    %v804 = vpop.f32.mrf.mxu0
    %v805 = vadd.f32 %v778, %v804
    %v806 = vand.u32 %v619, 4294901760
    %807 = vmatmul.f32.gmra.mxu0 %v806
    %v808 = vpop.f32.mrf.mxu0
    %v809 = vadd.f32 %v782, %v808
    %810 = vdwg.mxu0
    %811 = vst.msk [vmem:[#allocation8] sm:$0xff] %vm78, %v805
    %812 = vst.msk [vmem:[#allocation8 + $0x8] sm:$0xff] %vm78, %v809
    %813 = vmatpush.msra.mxu0 0.0
    %814 = vmatpush.msra.mxu0 0.0
    %815 = vmatpush.msra.mxu0 0.0
    %816 = vmatpush.msra.mxu0 0.0
    %817 = vmatpush.msra.mxu0 0.0
    %818 = vmatpush.msra.mxu0 0.0
    %819 = vmatpush.msra.mxu0 0.0
    %820 = vmatpush.msra.mxu0 0.0
    %821 = vmatpush.msra.mxu0 0.0
    %822 = vmatpush.msra.mxu0 0.0
    %823 = vmatpush.msra.mxu0 0.0
    %824 = vmatpush.msra.mxu0 0.0
    %825 = vmatpush.msra.mxu0 0.0
    %826 = vmatpush.msra.mxu0 0.0
    %v827 = vand.u32 %v581, 4294901760
    %828 = vmatpush.msra.mxu0 %v827
    %v829 = vand.u32 %v577, 4294901760
    %830 = vmatpush.msra.mxu0 %v829
    %v831 = vand.u32 %v616, 4294901760
    %v832 = vsub.f32 %v616, %v831
    %v833 = vand.u32 %v832, 4294901760
    %v834 = vsub.f32 %v832, %v833
    %v835 = vand.u32 %v834, 4294901760
    %836 = vmatmul.f32.gmra.mxu0 %v835
    %v837 = vpop.f32.mrf.mxu0
    %v838 = vadd.f32 0.0, %v837
    %v839 = vand.u32 %v619, 4294901760
    %v840 = vsub.f32 %v619, %v839
    %v841 = vand.u32 %v840, 4294901760
    %v842 = vsub.f32 %v840, %v841
    %v843 = vand.u32 %v842, 4294901760
    %844 = vmatmul.f32.gmra.mxu0 %v843
    %v845 = vpop.f32.mrf.mxu0
    %v846 = vadd.f32 0.0, %v845
    %847 = vdwg.mxu0
    %848 = vmatpush.msra.mxu0 0.0
    %849 = vmatpush.msra.mxu0 0.0
    %850 = vmatpush.msra.mxu0 0.0
    %851 = vmatpush.msra.mxu0 0.0
    %852 = vmatpush.msra.mxu0 0.0
    %853 = vmatpush.msra.mxu0 0.0
    %854 = vmatpush.msra.mxu0 0.0
    %855 = vmatpush.msra.mxu0 0.0
    %856 = vmatpush.msra.mxu0 0.0
    %857 = vmatpush.msra.mxu0 0.0
    %858 = vmatpush.msra.mxu0 0.0
    %859 = vmatpush.msra.mxu0 0.0
    %860 = vmatpush.msra.mxu0 0.0
    %861 = vmatpush.msra.mxu0 0.0
    %v862 = vand.u32 %v581, 4294901760
    %v863 = vsub.f32 %v581, %v862
    %v864 = vand.u32 %v863, 4294901760
    %v865 = vsub.f32 %v863, %v864
    %v866 = vand.u32 %v865, 4294901760
    %867 = vmatpush.msra.mxu0 %v866
    %v868 = vand.u32 %v577, 4294901760
    %v869 = vsub.f32 %v577, %v868
    %v870 = vand.u32 %v869, 4294901760
    %v871 = vsub.f32 %v869, %v870
    %v872 = vand.u32 %v871, 4294901760
    %873 = vmatpush.msra.mxu0 %v872
    %v874 = vand.u32 %v616, 4294901760
    %875 = vmatmul.f32.gmra.mxu0 %v874
    %v876 = vpop.f32.mrf.mxu0
    %v877 = vadd.f32 %v838, %v876
    %v878 = vand.u32 %v619, 4294901760
    %879 = vmatmul.f32.gmra.mxu0 %v878
    %v880 = vpop.f32.mrf.mxu0
    %v881 = vadd.f32 %v846, %v880
    %882 = vdwg.mxu0
    %883 = vmatpush.msra.mxu0 0.0
    %884 = vmatpush.msra.mxu0 0.0
    %885 = vmatpush.msra.mxu0 0.0
    %886 = vmatpush.msra.mxu0 0.0
    %887 = vmatpush.msra.mxu0 0.0
    %888 = vmatpush.msra.mxu0 0.0
    %889 = vmatpush.msra.mxu0 0.0
    %890 = vmatpush.msra.mxu0 0.0
    %891 = vmatpush.msra.mxu0 0.0
    %892 = vmatpush.msra.mxu0 0.0
    %893 = vmatpush.msra.mxu0 0.0
    %894 = vmatpush.msra.mxu0 0.0
    %895 = vmatpush.msra.mxu0 0.0
    %896 = vmatpush.msra.mxu0 0.0
    %v897 = vand.u32 %v581, 4294901760
    %v898 = vsub.f32 %v581, %v897
    %899 = vmatpush.msra.mxu0 %v898
    %v900 = vand.u32 %v577, 4294901760
    %v901 = vsub.f32 %v577, %v900
    %902 = vmatpush.msra.mxu0 %v901
    %v903 = vand.u32 %v616, 4294901760
    %v904 = vsub.f32 %v616, %v903
    %905 = vmatmul.f32.gmra.mxu0 %v904
    %v906 = vpop.f32.mrf.mxu0
    %v907 = vadd.f32 %v877, %v906
    %v908 = vand.u32 %v619, 4294901760
    %v909 = vsub.f32 %v619, %v908
    %910 = vmatmul.f32.gmra.mxu0 %v909
    %v911 = vpop.f32.mrf.mxu0
    %v912 = vadd.f32 %v881, %v911
    %913 = vdwg.mxu0
    %914 = vmatpush.msra.mxu0 0.0
    %915 = vmatpush.msra.mxu0 0.0
    %916 = vmatpush.msra.mxu0 0.0
    %917 = vmatpush.msra.mxu0 0.0
    %918 = vmatpush.msra.mxu0 0.0
    %919 = vmatpush.msra.mxu0 0.0
    %920 = vmatpush.msra.mxu0 0.0
    %921 = vmatpush.msra.mxu0 0.0
    %922 = vmatpush.msra.mxu0 0.0
    %923 = vmatpush.msra.mxu0 0.0
    %924 = vmatpush.msra.mxu0 0.0
    %925 = vmatpush.msra.mxu0 0.0
    %926 = vmatpush.msra.mxu0 0.0
    %927 = vmatpush.msra.mxu0 0.0
    %v928 = vand.u32 %v581, 4294901760
    %929 = vmatpush.msra.mxu0 %v928
    %v930 = vand.u32 %v577, 4294901760
    %931 = vmatpush.msra.mxu0 %v930
    %v932 = vand.u32 %v616, 4294901760
    %v933 = vsub.f32 %v616, %v932
    %v934 = vand.u32 %v933, 4294901760
    %935 = vmatmul.f32.gmra.mxu0 %v934
    %v936 = vpop.f32.mrf.mxu0
    %v937 = vadd.f32 %v907, %v936
    %v938 = vand.u32 %v619, 4294901760
    %v939 = vsub.f32 %v619, %v938
    %v940 = vand.u32 %v939, 4294901760
    %941 = vmatmul.f32.gmra.mxu0 %v940
    %v942 = vpop.f32.mrf.mxu0
    %v943 = vadd.f32 %v912, %v942
    %944 = vdwg.mxu0
    %945 = vmatpush.msra.mxu0 0.0
    %946 = vmatpush.msra.mxu0 0.0
    %947 = vmatpush.msra.mxu0 0.0
    %948 = vmatpush.msra.mxu0 0.0
    %949 = vmatpush.msra.mxu0 0.0
    %950 = vmatpush.msra.mxu0 0.0
    %951 = vmatpush.msra.mxu0 0.0
    %952 = vmatpush.msra.mxu0 0.0
    %953 = vmatpush.msra.mxu0 0.0
    %954 = vmatpush.msra.mxu0 0.0
    %955 = vmatpush.msra.mxu0 0.0
    %956 = vmatpush.msra.mxu0 0.0
    %957 = vmatpush.msra.mxu0 0.0
    %958 = vmatpush.msra.mxu0 0.0
    %v959 = vand.u32 %v581, 4294901760
    %v960 = vsub.f32 %v581, %v959
    %v961 = vand.u32 %v960, 4294901760
    %962 = vmatpush.msra.mxu0 %v961
    %v963 = vand.u32 %v577, 4294901760
    %v964 = vsub.f32 %v577, %v963
    %v965 = vand.u32 %v964, 4294901760
    %966 = vmatpush.msra.mxu0 %v965
    %v967 = vand.u32 %v616, 4294901760
    %968 = vmatmul.f32.gmra.mxu0 %v967
    %v969 = vpop.f32.mrf.mxu0
    %v970 = vadd.f32 %v937, %v969
    %v971 = vand.u32 %v619, 4294901760
    %972 = vmatmul.f32.gmra.mxu0 %v971
    %v973 = vpop.f32.mrf.mxu0
    %v974 = vadd.f32 %v943, %v973
    %975 = vdwg.mxu0
    %976 = vmatpush.msra.mxu0 0.0
    %977 = vmatpush.msra.mxu0 0.0
    %978 = vmatpush.msra.mxu0 0.0
    %979 = vmatpush.msra.mxu0 0.0
    %980 = vmatpush.msra.mxu0 0.0
    %981 = vmatpush.msra.mxu0 0.0
    %982 = vmatpush.msra.mxu0 0.0
    %983 = vmatpush.msra.mxu0 0.0
    %984 = vmatpush.msra.mxu0 0.0
    %985 = vmatpush.msra.mxu0 0.0
    %986 = vmatpush.msra.mxu0 0.0
    %987 = vmatpush.msra.mxu0 0.0
    %988 = vmatpush.msra.mxu0 0.0
    %989 = vmatpush.msra.mxu0 0.0
    %v990 = vand.u32 %v581, 4294901760
    %991 = vmatpush.msra.mxu0 %v990
    %v992 = vand.u32 %v577, 4294901760
    %993 = vmatpush.msra.mxu0 %v992
    %v994 = vand.u32 %v616, 4294901760
    %995 = vmatmul.f32.gmra.mxu0 %v994
    %v996 = vpop.f32.mrf.mxu0
    %v997 = vadd.f32 %v970, %v996
    %v998 = vand.u32 %v619, 4294901760
    %999 = vmatmul.f32.gmra.mxu0 %v998
    %v1000 = vpop.f32.mrf.mxu0
    %v1001 = vadd.f32 %v974, %v1000
    %1002 = vdwg.mxu0
    %s1003 = scalar_lea.vmem [#allocation8], 16
    %1004 = vst.msk [vmem:[%s1003] sm:$0xff] %vm78, %v997
    %1005 = vst.msk [vmem:[%s1003 + $0x8] sm:$0xff] %vm78, %v1001
    %1006 = vmatpush.msra.mxu0 0.0
    %1007 = vmatpush.msra.mxu0 0.0
    %1008 = vmatpush.msra.mxu0 0.0
    %1009 = vmatpush.msra.mxu0 0.0
    %1010 = vmatpush.msra.mxu0 0.0
    %1011 = vmatpush.msra.mxu0 0.0
    %1012 = vmatpush.msra.mxu0 0.0
    %1013 = vmatpush.msra.mxu0 0.0
    %1014 = vmatpush.msra.mxu0 0.0
    %1015 = vmatpush.msra.mxu0 0.0
    %1016 = vmatpush.msra.mxu0 0.0
    %1017 = vmatpush.msra.mxu0 0.0
    %1018 = vmatpush.msra.mxu0 0.0
    %1019 = vmatpush.msra.mxu0 0.0
    %v1020 = vand.u32 %v589, 4294901760
    %1021 = vmatpush.msra.mxu0 %v1020
    %v1022 = vand.u32 %v585, 4294901760
    %1023 = vmatpush.msra.mxu0 %v1022
    %v1024 = vand.u32 %v616, 4294901760
    %v1025 = vsub.f32 %v616, %v1024
    %v1026 = vand.u32 %v1025, 4294901760
    %v1027 = vsub.f32 %v1025, %v1026
    %v1028 = vand.u32 %v1027, 4294901760
    %1029 = vmatmul.f32.gmra.mxu0 %v1028
    %v1030 = vpop.f32.mrf.mxu0
    %v1031 = vadd.f32 0.0, %v1030
    %v1032 = vand.u32 %v619, 4294901760
    %v1033 = vsub.f32 %v619, %v1032
    %v1034 = vand.u32 %v1033, 4294901760
    %v1035 = vsub.f32 %v1033, %v1034
    %v1036 = vand.u32 %v1035, 4294901760
    %1037 = vmatmul.f32.gmra.mxu0 %v1036
    %v1038 = vpop.f32.mrf.mxu0
    %v1039 = vadd.f32 0.0, %v1038
    %1040 = vdwg.mxu0
    %1041 = vmatpush.msra.mxu0 0.0
    %1042 = vmatpush.msra.mxu0 0.0
    %1043 = vmatpush.msra.mxu0 0.0
    %1044 = vmatpush.msra.mxu0 0.0
    %1045 = vmatpush.msra.mxu0 0.0
    %1046 = vmatpush.msra.mxu0 0.0
    %1047 = vmatpush.msra.mxu0 0.0
    %1048 = vmatpush.msra.mxu0 0.0
    %1049 = vmatpush.msra.mxu0 0.0
    %1050 = vmatpush.msra.mxu0 0.0
    %1051 = vmatpush.msra.mxu0 0.0
    %1052 = vmatpush.msra.mxu0 0.0
    %1053 = vmatpush.msra.mxu0 0.0
    %1054 = vmatpush.msra.mxu0 0.0
    %v1055 = vand.u32 %v589, 4294901760
    %v1056 = vsub.f32 %v589, %v1055
    %v1057 = vand.u32 %v1056, 4294901760
    %v1058 = vsub.f32 %v1056, %v1057
    %v1059 = vand.u32 %v1058, 4294901760
    %1060 = vmatpush.msra.mxu0 %v1059
    %v1061 = vand.u32 %v585, 4294901760
    %v1062 = vsub.f32 %v585, %v1061
    %v1063 = vand.u32 %v1062, 4294901760
    %v1064 = vsub.f32 %v1062, %v1063
    %v1065 = vand.u32 %v1064, 4294901760
    %1066 = vmatpush.msra.mxu0 %v1065
    %v1067 = vand.u32 %v616, 4294901760
    %1068 = vmatmul.f32.gmra.mxu0 %v1067
    %v1069 = vpop.f32.mrf.mxu0
    %v1070 = vadd.f32 %v1031, %v1069
    %v1071 = vand.u32 %v619, 4294901760
    %1072 = vmatmul.f32.gmra.mxu0 %v1071
    %v1073 = vpop.f32.mrf.mxu0
    %v1074 = vadd.f32 %v1039, %v1073
    %1075 = vdwg.mxu0
    %1076 = vmatpush.msra.mxu0 0.0
    %1077 = vmatpush.msra.mxu0 0.0
    %1078 = vmatpush.msra.mxu0 0.0
    %1079 = vmatpush.msra.mxu0 0.0
    %1080 = vmatpush.msra.mxu0 0.0
    %1081 = vmatpush.msra.mxu0 0.0
    %1082 = vmatpush.msra.mxu0 0.0
    %1083 = vmatpush.msra.mxu0 0.0
    %1084 = vmatpush.msra.mxu0 0.0
    %1085 = vmatpush.msra.mxu0 0.0
    %1086 = vmatpush.msra.mxu0 0.0
    %1087 = vmatpush.msra.mxu0 0.0
    %1088 = vmatpush.msra.mxu0 0.0
    %1089 = vmatpush.msra.mxu0 0.0
    %v1090 = vand.u32 %v589, 4294901760
    %v1091 = vsub.f32 %v589, %v1090
    %1092 = vmatpush.msra.mxu0 %v1091
    %v1093 = vand.u32 %v585, 4294901760
    %v1094 = vsub.f32 %v585, %v1093
    %1095 = vmatpush.msra.mxu0 %v1094
    %v1096 = vand.u32 %v616, 4294901760
    %v1097 = vsub.f32 %v616, %v1096
    %1098 = vmatmul.f32.gmra.mxu0 %v1097
    %v1099 = vpop.f32.mrf.mxu0
    %v1100 = vadd.f32 %v1070, %v1099
    %v1101 = vand.u32 %v619, 4294901760
    %v1102 = vsub.f32 %v619, %v1101
    %1103 = vmatmul.f32.gmra.mxu0 %v1102
    %v1104 = vpop.f32.mrf.mxu0
    %v1105 = vadd.f32 %v1074, %v1104
    %1106 = vdwg.mxu0
    %1107 = vmatpush.msra.mxu0 0.0
    %1108 = vmatpush.msra.mxu0 0.0
    %1109 = vmatpush.msra.mxu0 0.0
    %1110 = vmatpush.msra.mxu0 0.0
    %1111 = vmatpush.msra.mxu0 0.0
    %1112 = vmatpush.msra.mxu0 0.0
    %1113 = vmatpush.msra.mxu0 0.0
    %1114 = vmatpush.msra.mxu0 0.0
    %1115 = vmatpush.msra.mxu0 0.0
    %1116 = vmatpush.msra.mxu0 0.0
    %1117 = vmatpush.msra.mxu0 0.0
    %1118 = vmatpush.msra.mxu0 0.0
    %1119 = vmatpush.msra.mxu0 0.0
    %1120 = vmatpush.msra.mxu0 0.0
    %v1121 = vand.u32 %v589, 4294901760
    %1122 = vmatpush.msra.mxu0 %v1121
    %v1123 = vand.u32 %v585, 4294901760
    %1124 = vmatpush.msra.mxu0 %v1123
    %v1125 = vand.u32 %v616, 4294901760
    %v1126 = vsub.f32 %v616, %v1125
    %v1127 = vand.u32 %v1126, 4294901760
    %1128 = vmatmul.f32.gmra.mxu0 %v1127
    %v1129 = vpop.f32.mrf.mxu0
    %v1130 = vadd.f32 %v1100, %v1129
    %v1131 = vand.u32 %v619, 4294901760
    %v1132 = vsub.f32 %v619, %v1131
    %v1133 = vand.u32 %v1132, 4294901760
    %1134 = vmatmul.f32.gmra.mxu0 %v1133
    %v1135 = vpop.f32.mrf.mxu0
    %v1136 = vadd.f32 %v1105, %v1135
    %1137 = vdwg.mxu0
    %1138 = vmatpush.msra.mxu0 0.0
    %1139 = vmatpush.msra.mxu0 0.0
    %1140 = vmatpush.msra.mxu0 0.0
    %1141 = vmatpush.msra.mxu0 0.0
    %1142 = vmatpush.msra.mxu0 0.0
    %1143 = vmatpush.msra.mxu0 0.0
    %1144 = vmatpush.msra.mxu0 0.0
    %1145 = vmatpush.msra.mxu0 0.0
    %1146 = vmatpush.msra.mxu0 0.0
    %1147 = vmatpush.msra.mxu0 0.0
    %1148 = vmatpush.msra.mxu0 0.0
    %1149 = vmatpush.msra.mxu0 0.0
    %1150 = vmatpush.msra.mxu0 0.0
    %1151 = vmatpush.msra.mxu0 0.0
    %v1152 = vand.u32 %v589, 4294901760
    %v1153 = vsub.f32 %v589, %v1152
    %v1154 = vand.u32 %v1153, 4294901760
    %1155 = vmatpush.msra.mxu0 %v1154
    %v1156 = vand.u32 %v585, 4294901760
    %v1157 = vsub.f32 %v585, %v1156
    %v1158 = vand.u32 %v1157, 4294901760
    %1159 = vmatpush.msra.mxu0 %v1158
    %v1160 = vand.u32 %v616, 4294901760
    %1161 = vmatmul.f32.gmra.mxu0 %v1160
    %v1162 = vpop.f32.mrf.mxu0
    %v1163 = vadd.f32 %v1130, %v1162
    %v1164 = vand.u32 %v619, 4294901760
    %1165 = vmatmul.f32.gmra.mxu0 %v1164
    %v1166 = vpop.f32.mrf.mxu0
    %v1167 = vadd.f32 %v1136, %v1166
    %1168 = vdwg.mxu0
    %1169 = vmatpush.msra.mxu0 0.0
    %1170 = vmatpush.msra.mxu0 0.0
    %1171 = vmatpush.msra.mxu0 0.0
    %1172 = vmatpush.msra.mxu0 0.0
    %1173 = vmatpush.msra.mxu0 0.0
    %1174 = vmatpush.msra.mxu0 0.0
    %1175 = vmatpush.msra.mxu0 0.0
    %1176 = vmatpush.msra.mxu0 0.0
    %1177 = vmatpush.msra.mxu0 0.0
    %1178 = vmatpush.msra.mxu0 0.0
    %1179 = vmatpush.msra.mxu0 0.0
    %1180 = vmatpush.msra.mxu0 0.0
    %1181 = vmatpush.msra.mxu0 0.0
    %1182 = vmatpush.msra.mxu0 0.0
    %v1183 = vand.u32 %v589, 4294901760
    %1184 = vmatpush.msra.mxu0 %v1183
    %v1185 = vand.u32 %v585, 4294901760
    %1186 = vmatpush.msra.mxu0 %v1185
    %v1187 = vand.u32 %v616, 4294901760
    %1188 = vmatmul.f32.gmra.mxu0 %v1187
    %v1189 = vpop.f32.mrf.mxu0
    %v1190 = vadd.f32 %v1163, %v1189
    %v1191 = vand.u32 %v619, 4294901760
    %1192 = vmatmul.f32.gmra.mxu0 %v1191
    %v1193 = vpop.f32.mrf.mxu0
    %v1194 = vadd.f32 %v1167, %v1193
    %1195 = vdwg.mxu0
    %s1196 = scalar_lea.vmem [#allocation8], 32
    %1197 = vst.msk [vmem:[%s1196] sm:$0xff] %vm78, %v1190
    %1198 = vst.msk [vmem:[%s1196 + $0x8] sm:$0xff] %vm78, %v1194
    %1199 = vmatpush.msra.mxu0 0.0
    %1200 = vmatpush.msra.mxu0 0.0
    %1201 = vmatpush.msra.mxu0 0.0
    %1202 = vmatpush.msra.mxu0 0.0
    %1203 = vmatpush.msra.mxu0 0.0
    %1204 = vmatpush.msra.mxu0 0.0
    %1205 = vmatpush.msra.mxu0 0.0
    %1206 = vmatpush.msra.mxu0 0.0
    %1207 = vmatpush.msra.mxu0 0.0
    %1208 = vmatpush.msra.mxu0 0.0
    %1209 = vmatpush.msra.mxu0 0.0
    %1210 = vmatpush.msra.mxu0 0.0
    %1211 = vmatpush.msra.mxu0 0.0
    %1212 = vmatpush.msra.mxu0 0.0
    %v1213 = vand.u32 %v597, 4294901760
    %1214 = vmatpush.msra.mxu0 %v1213
    %v1215 = vand.u32 %v593, 4294901760
    %1216 = vmatpush.msra.mxu0 %v1215
    %v1217 = vand.u32 %v616, 4294901760
    %v1218 = vsub.f32 %v616, %v1217
    %v1219 = vand.u32 %v1218, 4294901760
    %v1220 = vsub.f32 %v1218, %v1219
    %v1221 = vand.u32 %v1220, 4294901760
    %1222 = vmatmul.f32.gmra.mxu0 %v1221
    %v1223 = vpop.f32.mrf.mxu0
    %v1224 = vadd.f32 0.0, %v1223
    %v1225 = vand.u32 %v619, 4294901760
    %v1226 = vsub.f32 %v619, %v1225
    %v1227 = vand.u32 %v1226, 4294901760
    %v1228 = vsub.f32 %v1226, %v1227
    %v1229 = vand.u32 %v1228, 4294901760
    %1230 = vmatmul.f32.gmra.mxu0 %v1229
    %v1231 = vpop.f32.mrf.mxu0
    %v1232 = vadd.f32 0.0, %v1231
    %1233 = vdwg.mxu0
    %1234 = vmatpush.msra.mxu0 0.0
    %1235 = vmatpush.msra.mxu0 0.0
    %1236 = vmatpush.msra.mxu0 0.0
    %1237 = vmatpush.msra.mxu0 0.0
    %1238 = vmatpush.msra.mxu0 0.0
    %1239 = vmatpush.msra.mxu0 0.0
    %1240 = vmatpush.msra.mxu0 0.0
    %1241 = vmatpush.msra.mxu0 0.0
    %1242 = vmatpush.msra.mxu0 0.0
    %1243 = vmatpush.msra.mxu0 0.0
    %1244 = vmatpush.msra.mxu0 0.0
    %1245 = vmatpush.msra.mxu0 0.0
    %1246 = vmatpush.msra.mxu0 0.0
    %1247 = vmatpush.msra.mxu0 0.0
    %v1248 = vand.u32 %v597, 4294901760
    %v1249 = vsub.f32 %v597, %v1248
    %v1250 = vand.u32 %v1249, 4294901760
    %v1251 = vsub.f32 %v1249, %v1250
    %v1252 = vand.u32 %v1251, 4294901760
    %1253 = vmatpush.msra.mxu0 %v1252
    %v1254 = vand.u32 %v593, 4294901760
    %v1255 = vsub.f32 %v593, %v1254
    %v1256 = vand.u32 %v1255, 4294901760
    %v1257 = vsub.f32 %v1255, %v1256
    %v1258 = vand.u32 %v1257, 4294901760
    %1259 = vmatpush.msra.mxu0 %v1258
    %v1260 = vand.u32 %v616, 4294901760
    %1261 = vmatmul.f32.gmra.mxu0 %v1260
    %v1262 = vpop.f32.mrf.mxu0
    %v1263 = vadd.f32 %v1224, %v1262
    %v1264 = vand.u32 %v619, 4294901760
    %1265 = vmatmul.f32.gmra.mxu0 %v1264
    %v1266 = vpop.f32.mrf.mxu0
    %v1267 = vadd.f32 %v1232, %v1266
    %1268 = vdwg.mxu0
    %1269 = vmatpush.msra.mxu0 0.0
    %1270 = vmatpush.msra.mxu0 0.0
    %1271 = vmatpush.msra.mxu0 0.0
    %1272 = vmatpush.msra.mxu0 0.0
    %1273 = vmatpush.msra.mxu0 0.0
    %1274 = vmatpush.msra.mxu0 0.0
    %1275 = vmatpush.msra.mxu0 0.0
    %1276 = vmatpush.msra.mxu0 0.0
    %1277 = vmatpush.msra.mxu0 0.0
    %1278 = vmatpush.msra.mxu0 0.0
    %1279 = vmatpush.msra.mxu0 0.0
    %1280 = vmatpush.msra.mxu0 0.0
    %1281 = vmatpush.msra.mxu0 0.0
    %1282 = vmatpush.msra.mxu0 0.0
    %v1283 = vand.u32 %v597, 4294901760
    %v1284 = vsub.f32 %v597, %v1283
    %1285 = vmatpush.msra.mxu0 %v1284
    %v1286 = vand.u32 %v593, 4294901760
    %v1287 = vsub.f32 %v593, %v1286
    %1288 = vmatpush.msra.mxu0 %v1287
    %v1289 = vand.u32 %v616, 4294901760
    %v1290 = vsub.f32 %v616, %v1289
    %1291 = vmatmul.f32.gmra.mxu0 %v1290
    %v1292 = vpop.f32.mrf.mxu0
    %v1293 = vadd.f32 %v1263, %v1292
    %v1294 = vand.u32 %v619, 4294901760
    %v1295 = vsub.f32 %v619, %v1294
    %1296 = vmatmul.f32.gmra.mxu0 %v1295
    %v1297 = vpop.f32.mrf.mxu0
    %v1298 = vadd.f32 %v1267, %v1297
    %1299 = vdwg.mxu0
    %1300 = vmatpush.msra.mxu0 0.0
    %1301 = vmatpush.msra.mxu0 0.0
    %1302 = vmatpush.msra.mxu0 0.0
    %1303 = vmatpush.msra.mxu0 0.0
    %1304 = vmatpush.msra.mxu0 0.0
    %1305 = vmatpush.msra.mxu0 0.0
    %1306 = vmatpush.msra.mxu0 0.0
    %1307 = vmatpush.msra.mxu0 0.0
    %1308 = vmatpush.msra.mxu0 0.0
    %1309 = vmatpush.msra.mxu0 0.0
    %1310 = vmatpush.msra.mxu0 0.0
    %1311 = vmatpush.msra.mxu0 0.0
    %1312 = vmatpush.msra.mxu0 0.0
    %1313 = vmatpush.msra.mxu0 0.0
    %v1314 = vand.u32 %v597, 4294901760
    %1315 = vmatpush.msra.mxu0 %v1314
    %v1316 = vand.u32 %v593, 4294901760
    %1317 = vmatpush.msra.mxu0 %v1316
    %v1318 = vand.u32 %v616, 4294901760
    %v1319 = vsub.f32 %v616, %v1318
    %v1320 = vand.u32 %v1319, 4294901760
    %1321 = vmatmul.f32.gmra.mxu0 %v1320
    %v1322 = vpop.f32.mrf.mxu0
    %v1323 = vadd.f32 %v1293, %v1322
    %v1324 = vand.u32 %v619, 4294901760
    %v1325 = vsub.f32 %v619, %v1324
    %v1326 = vand.u32 %v1325, 4294901760
    %1327 = vmatmul.f32.gmra.mxu0 %v1326
    %v1328 = vpop.f32.mrf.mxu0
    %v1329 = vadd.f32 %v1298, %v1328
    %1330 = vdwg.mxu0
    %1331 = vmatpush.msra.mxu0 0.0
    %1332 = vmatpush.msra.mxu0 0.0
    %1333 = vmatpush.msra.mxu0 0.0
    %1334 = vmatpush.msra.mxu0 0.0
    %1335 = vmatpush.msra.mxu0 0.0
    %1336 = vmatpush.msra.mxu0 0.0
    %1337 = vmatpush.msra.mxu0 0.0
    %1338 = vmatpush.msra.mxu0 0.0
    %1339 = vmatpush.msra.mxu0 0.0
    %1340 = vmatpush.msra.mxu0 0.0
    %1341 = vmatpush.msra.mxu0 0.0
    %1342 = vmatpush.msra.mxu0 0.0
    %1343 = vmatpush.msra.mxu0 0.0
    %1344 = vmatpush.msra.mxu0 0.0
    %v1345 = vand.u32 %v597, 4294901760
    %v1346 = vsub.f32 %v597, %v1345
    %v1347 = vand.u32 %v1346, 4294901760
    %1348 = vmatpush.msra.mxu0 %v1347
    %v1349 = vand.u32 %v593, 4294901760
    %v1350 = vsub.f32 %v593, %v1349
    %v1351 = vand.u32 %v1350, 4294901760
    %1352 = vmatpush.msra.mxu0 %v1351
    %v1353 = vand.u32 %v616, 4294901760
    %1354 = vmatmul.f32.gmra.mxu0 %v1353
    %v1355 = vpop.f32.mrf.mxu0
    %v1356 = vadd.f32 %v1323, %v1355
    %v1357 = vand.u32 %v619, 4294901760
    %1358 = vmatmul.f32.gmra.mxu0 %v1357
    %v1359 = vpop.f32.mrf.mxu0
    %v1360 = vadd.f32 %v1329, %v1359
    %1361 = vdwg.mxu0
    %1362 = vmatpush.msra.mxu0 0.0
    %1363 = vmatpush.msra.mxu0 0.0
    %1364 = vmatpush.msra.mxu0 0.0
    %1365 = vmatpush.msra.mxu0 0.0
    %1366 = vmatpush.msra.mxu0 0.0
    %1367 = vmatpush.msra.mxu0 0.0
    %1368 = vmatpush.msra.mxu0 0.0
    %1369 = vmatpush.msra.mxu0 0.0
    %1370 = vmatpush.msra.mxu0 0.0
    %1371 = vmatpush.msra.mxu0 0.0
    %1372 = vmatpush.msra.mxu0 0.0
    %1373 = vmatpush.msra.mxu0 0.0
    %1374 = vmatpush.msra.mxu0 0.0
    %1375 = vmatpush.msra.mxu0 0.0
    %v1376 = vand.u32 %v597, 4294901760
    %1377 = vmatpush.msra.mxu0 %v1376
    %v1378 = vand.u32 %v593, 4294901760
    %1379 = vmatpush.msra.mxu0 %v1378
    %v1380 = vand.u32 %v616, 4294901760
    %1381 = vmatmul.f32.gmra.mxu0 %v1380
    %v1382 = vpop.f32.mrf.mxu0
    %v1383 = vadd.f32 %v1356, %v1382
    %v1384 = vand.u32 %v619, 4294901760
    %1385 = vmatmul.f32.gmra.mxu0 %v1384
    %v1386 = vpop.f32.mrf.mxu0
    %v1387 = vadd.f32 %v1360, %v1386
    %1388 = vdwg.mxu0
    %s1389 = scalar_lea.vmem [#allocation8], 48
    %1390 = vst.msk [vmem:[%s1389] sm:$0xff] %vm78, %v1383
    %1391 = vst.msk [vmem:[%s1389 + $0x8] sm:$0xff] %vm78, %v1387
    %1392 = vmatpush.msra.mxu0 0.0
    %1393 = vmatpush.msra.mxu0 0.0
    %1394 = vmatpush.msra.mxu0 0.0
    %1395 = vmatpush.msra.mxu0 0.0
    %1396 = vmatpush.msra.mxu0 0.0
    %1397 = vmatpush.msra.mxu0 0.0
    %1398 = vmatpush.msra.mxu0 0.0
    %1399 = vmatpush.msra.mxu0 0.0
    %1400 = vmatpush.msra.mxu0 0.0
    %1401 = vmatpush.msra.mxu0 0.0
    %1402 = vmatpush.msra.mxu0 0.0
    %1403 = vmatpush.msra.mxu0 0.0
    %1404 = vmatpush.msra.mxu0 0.0
    %1405 = vmatpush.msra.mxu0 0.0
    %v1406 = vand.u32 %v605, 4294901760
    %1407 = vmatpush.msra.mxu0 %v1406
    %v1408 = vand.u32 %v601, 4294901760
    %1409 = vmatpush.msra.mxu0 %v1408
    %v1410 = vand.u32 %v616, 4294901760
    %v1411 = vsub.f32 %v616, %v1410
    %v1412 = vand.u32 %v1411, 4294901760
    %v1413 = vsub.f32 %v1411, %v1412
    %v1414 = vand.u32 %v1413, 4294901760
    %1415 = vmatmul.f32.gmra.mxu0 %v1414
    %v1416 = vpop.f32.mrf.mxu0
    %v1417 = vadd.f32 0.0, %v1416
    %v1418 = vand.u32 %v619, 4294901760
    %v1419 = vsub.f32 %v619, %v1418
    %v1420 = vand.u32 %v1419, 4294901760
    %v1421 = vsub.f32 %v1419, %v1420
    %v1422 = vand.u32 %v1421, 4294901760
    %1423 = vmatmul.f32.gmra.mxu0 %v1422
    %v1424 = vpop.f32.mrf.mxu0
    %v1425 = vadd.f32 0.0, %v1424
    %1426 = vdwg.mxu0
    %1427 = vmatpush.msra.mxu0 0.0
    %1428 = vmatpush.msra.mxu0 0.0
    %1429 = vmatpush.msra.mxu0 0.0
    %1430 = vmatpush.msra.mxu0 0.0
    %1431 = vmatpush.msra.mxu0 0.0
    %1432 = vmatpush.msra.mxu0 0.0
    %1433 = vmatpush.msra.mxu0 0.0
    %1434 = vmatpush.msra.mxu0 0.0
    %1435 = vmatpush.msra.mxu0 0.0
    %1436 = vmatpush.msra.mxu0 0.0
    %1437 = vmatpush.msra.mxu0 0.0
    %1438 = vmatpush.msra.mxu0 0.0
    %1439 = vmatpush.msra.mxu0 0.0
    %1440 = vmatpush.msra.mxu0 0.0
    %v1441 = vand.u32 %v605, 4294901760
    %v1442 = vsub.f32 %v605, %v1441
    %v1443 = vand.u32 %v1442, 4294901760
    %v1444 = vsub.f32 %v1442, %v1443
    %v1445 = vand.u32 %v1444, 4294901760
    %1446 = vmatpush.msra.mxu0 %v1445
    %v1447 = vand.u32 %v601, 4294901760
    %v1448 = vsub.f32 %v601, %v1447
    %v1449 = vand.u32 %v1448, 4294901760
    %v1450 = vsub.f32 %v1448, %v1449
    %v1451 = vand.u32 %v1450, 4294901760
    %1452 = vmatpush.msra.mxu0 %v1451
    %v1453 = vand.u32 %v616, 4294901760
    %1454 = vmatmul.f32.gmra.mxu0 %v1453
    %v1455 = vpop.f32.mrf.mxu0
    %v1456 = vadd.f32 %v1417, %v1455
    %v1457 = vand.u32 %v619, 4294901760
    %1458 = vmatmul.f32.gmra.mxu0 %v1457
    %v1459 = vpop.f32.mrf.mxu0
    %v1460 = vadd.f32 %v1425, %v1459
    %1461 = vdwg.mxu0
    %1462 = vmatpush.msra.mxu0 0.0
    %1463 = vmatpush.msra.mxu0 0.0
    %1464 = vmatpush.msra.mxu0 0.0
    %1465 = vmatpush.msra.mxu0 0.0
    %1466 = vmatpush.msra.mxu0 0.0
    %1467 = vmatpush.msra.mxu0 0.0
    %1468 = vmatpush.msra.mxu0 0.0
    %1469 = vmatpush.msra.mxu0 0.0
    %1470 = vmatpush.msra.mxu0 0.0
    %1471 = vmatpush.msra.mxu0 0.0
    %1472 = vmatpush.msra.mxu0 0.0
    %1473 = vmatpush.msra.mxu0 0.0
    %1474 = vmatpush.msra.mxu0 0.0
    %1475 = vmatpush.msra.mxu0 0.0
    %v1476 = vand.u32 %v605, 4294901760
    %v1477 = vsub.f32 %v605, %v1476
    %1478 = vmatpush.msra.mxu0 %v1477
    %v1479 = vand.u32 %v601, 4294901760
    %v1480 = vsub.f32 %v601, %v1479
    %1481 = vmatpush.msra.mxu0 %v1480
    %v1482 = vand.u32 %v616, 4294901760
    %v1483 = vsub.f32 %v616, %v1482
    %1484 = vmatmul.f32.gmra.mxu0 %v1483
    %v1485 = vpop.f32.mrf.mxu0
    %v1486 = vadd.f32 %v1456, %v1485
    %v1487 = vand.u32 %v619, 4294901760
    %v1488 = vsub.f32 %v619, %v1487
    %1489 = vmatmul.f32.gmra.mxu0 %v1488
    %v1490 = vpop.f32.mrf.mxu0
    %v1491 = vadd.f32 %v1460, %v1490
    %1492 = vdwg.mxu0
    %1493 = vmatpush.msra.mxu0 0.0
    %1494 = vmatpush.msra.mxu0 0.0
    %1495 = vmatpush.msra.mxu0 0.0
    %1496 = vmatpush.msra.mxu0 0.0
    %1497 = vmatpush.msra.mxu0 0.0
    %1498 = vmatpush.msra.mxu0 0.0
    %1499 = vmatpush.msra.mxu0 0.0
    %1500 = vmatpush.msra.mxu0 0.0
    %1501 = vmatpush.msra.mxu0 0.0
    %1502 = vmatpush.msra.mxu0 0.0
    %1503 = vmatpush.msra.mxu0 0.0
    %1504 = vmatpush.msra.mxu0 0.0
    %1505 = vmatpush.msra.mxu0 0.0
    %1506 = vmatpush.msra.mxu0 0.0
    %v1507 = vand.u32 %v605, 4294901760
    %1508 = vmatpush.msra.mxu0 %v1507
    %v1509 = vand.u32 %v601, 4294901760
    %1510 = vmatpush.msra.mxu0 %v1509
    %v1511 = vand.u32 %v616, 4294901760
    %v1512 = vsub.f32 %v616, %v1511
    %v1513 = vand.u32 %v1512, 4294901760
    %1514 = vmatmul.f32.gmra.mxu0 %v1513
    %v1515 = vpop.f32.mrf.mxu0
    %v1516 = vadd.f32 %v1486, %v1515
    %v1517 = vand.u32 %v619, 4294901760
    %v1518 = vsub.f32 %v619, %v1517
    %v1519 = vand.u32 %v1518, 4294901760
    %1520 = vmatmul.f32.gmra.mxu0 %v1519
    %v1521 = vpop.f32.mrf.mxu0
    %v1522 = vadd.f32 %v1491, %v1521
    %1523 = vdwg.mxu0
    %1524 = vmatpush.msra.mxu0 0.0
    %1525 = vmatpush.msra.mxu0 0.0
    %1526 = vmatpush.msra.mxu0 0.0
    %1527 = vmatpush.msra.mxu0 0.0
    %1528 = vmatpush.msra.mxu0 0.0
    %1529 = vmatpush.msra.mxu0 0.0
    %1530 = vmatpush.msra.mxu0 0.0
    %1531 = vmatpush.msra.mxu0 0.0
    %1532 = vmatpush.msra.mxu0 0.0
    %1533 = vmatpush.msra.mxu0 0.0
    %1534 = vmatpush.msra.mxu0 0.0
    %1535 = vmatpush.msra.mxu0 0.0
    %1536 = vmatpush.msra.mxu0 0.0
    %1537 = vmatpush.msra.mxu0 0.0
    %v1538 = vand.u32 %v605, 4294901760
    %v1539 = vsub.f32 %v605, %v1538
    %v1540 = vand.u32 %v1539, 4294901760
    %1541 = vmatpush.msra.mxu0 %v1540
    %v1542 = vand.u32 %v601, 4294901760
    %v1543 = vsub.f32 %v601, %v1542
    %v1544 = vand.u32 %v1543, 4294901760
    %1545 = vmatpush.msra.mxu0 %v1544
    %v1546 = vand.u32 %v616, 4294901760
    %1547 = vmatmul.f32.gmra.mxu0 %v1546
    %v1548 = vpop.f32.mrf.mxu0
    %v1549 = vadd.f32 %v1516, %v1548
    %v1550 = vand.u32 %v619, 4294901760
    %1551 = vmatmul.f32.gmra.mxu0 %v1550
    %v1552 = vpop.f32.mrf.mxu0
    %v1553 = vadd.f32 %v1522, %v1552
    %1554 = vdwg.mxu0
    %1555 = vmatpush.msra.mxu0 0.0
    %1556 = vmatpush.msra.mxu0 0.0
    %1557 = vmatpush.msra.mxu0 0.0
    %1558 = vmatpush.msra.mxu0 0.0
    %1559 = vmatpush.msra.mxu0 0.0
    %1560 = vmatpush.msra.mxu0 0.0
    %1561 = vmatpush.msra.mxu0 0.0
    %1562 = vmatpush.msra.mxu0 0.0
    %1563 = vmatpush.msra.mxu0 0.0
    %1564 = vmatpush.msra.mxu0 0.0
    %1565 = vmatpush.msra.mxu0 0.0
    %1566 = vmatpush.msra.mxu0 0.0
    %1567 = vmatpush.msra.mxu0 0.0
    %1568 = vmatpush.msra.mxu0 0.0
    %v1569 = vand.u32 %v605, 4294901760
    %1570 = vmatpush.msra.mxu0 %v1569
    %v1571 = vand.u32 %v601, 4294901760
    %1572 = vmatpush.msra.mxu0 %v1571
    %v1573 = vand.u32 %v616, 4294901760
    %1574 = vmatmul.f32.gmra.mxu0 %v1573
    %v1575 = vpop.f32.mrf.mxu0
    %v1576 = vadd.f32 %v1549, %v1575
    %v1577 = vand.u32 %v619, 4294901760
    %1578 = vmatmul.f32.gmra.mxu0 %v1577
    %v1579 = vpop.f32.mrf.mxu0
    %v1580 = vadd.f32 %v1553, %v1579
    %1581 = vdwg.mxu0
    %s1582 = scalar_lea.vmem [#allocation8], 64
    %1583 = vst.msk [vmem:[%s1582] sm:$0xff] %vm78, %v1576
    %1584 = vst.msk [vmem:[%s1582 + $0x8] sm:$0xff] %vm78, %v1580
    %1585 = vmatpush.msra.mxu0 0.0
    %1586 = vmatpush.msra.mxu0 0.0
    %1587 = vmatpush.msra.mxu0 0.0
    %1588 = vmatpush.msra.mxu0 0.0
    %1589 = vmatpush.msra.mxu0 0.0
    %1590 = vmatpush.msra.mxu0 0.0
    %1591 = vmatpush.msra.mxu0 0.0
    %1592 = vmatpush.msra.mxu0 0.0
    %1593 = vmatpush.msra.mxu0 0.0
    %1594 = vmatpush.msra.mxu0 0.0
    %1595 = vmatpush.msra.mxu0 0.0
    %1596 = vmatpush.msra.mxu0 0.0
    %1597 = vmatpush.msra.mxu0 0.0
    %1598 = vmatpush.msra.mxu0 0.0
    %v1599 = vand.u32 %v613, 4294901760
    %1600 = vmatpush.msra.mxu0 %v1599
    %v1601 = vand.u32 %v609, 4294901760
    %1602 = vmatpush.msra.mxu0 %v1601
    %v1603 = vand.u32 %v616, 4294901760
    %v1604 = vsub.f32 %v616, %v1603
    %v1605 = vand.u32 %v1604, 4294901760
    %v1606 = vsub.f32 %v1604, %v1605
    %v1607 = vand.u32 %v1606, 4294901760
    %1608 = vmatmul.f32.gmra.mxu0 %v1607
    %v1609 = vpop.f32.mrf.mxu0
    %v1610 = vadd.f32 0.0, %v1609
    %v1611 = vand.u32 %v619, 4294901760
    %v1612 = vsub.f32 %v619, %v1611
    %v1613 = vand.u32 %v1612, 4294901760
    %v1614 = vsub.f32 %v1612, %v1613
    %v1615 = vand.u32 %v1614, 4294901760
    %1616 = vmatmul.f32.gmra.mxu0 %v1615
    %v1617 = vpop.f32.mrf.mxu0
    %v1618 = vadd.f32 0.0, %v1617
    %1619 = vdwg.mxu0
    %1620 = vmatpush.msra.mxu0 0.0
    %1621 = vmatpush.msra.mxu0 0.0
    %1622 = vmatpush.msra.mxu0 0.0
    %1623 = vmatpush.msra.mxu0 0.0
    %1624 = vmatpush.msra.mxu0 0.0
    %1625 = vmatpush.msra.mxu0 0.0
    %1626 = vmatpush.msra.mxu0 0.0
    %1627 = vmatpush.msra.mxu0 0.0
    %1628 = vmatpush.msra.mxu0 0.0
    %1629 = vmatpush.msra.mxu0 0.0
    %1630 = vmatpush.msra.mxu0 0.0
    %1631 = vmatpush.msra.mxu0 0.0
    %1632 = vmatpush.msra.mxu0 0.0
    %1633 = vmatpush.msra.mxu0 0.0
    %v1634 = vand.u32 %v613, 4294901760
    %v1635 = vsub.f32 %v613, %v1634
    %v1636 = vand.u32 %v1635, 4294901760
    %v1637 = vsub.f32 %v1635, %v1636
    %v1638 = vand.u32 %v1637, 4294901760
    %1639 = vmatpush.msra.mxu0 %v1638
    %v1640 = vand.u32 %v609, 4294901760
    %v1641 = vsub.f32 %v609, %v1640
    %v1642 = vand.u32 %v1641, 4294901760
    %v1643 = vsub.f32 %v1641, %v1642
    %v1644 = vand.u32 %v1643, 4294901760
    %1645 = vmatpush.msra.mxu0 %v1644
    %v1646 = vand.u32 %v616, 4294901760
    %1647 = vmatmul.f32.gmra.mxu0 %v1646
    %v1648 = vpop.f32.mrf.mxu0
    %v1649 = vadd.f32 %v1610, %v1648
    %v1650 = vand.u32 %v619, 4294901760
    %1651 = vmatmul.f32.gmra.mxu0 %v1650
    %v1652 = vpop.f32.mrf.mxu0
    %v1653 = vadd.f32 %v1618, %v1652
    %1654 = vdwg.mxu0
    %1655 = vmatpush.msra.mxu0 0.0
    %1656 = vmatpush.msra.mxu0 0.0
    %1657 = vmatpush.msra.mxu0 0.0
    %1658 = vmatpush.msra.mxu0 0.0
    %1659 = vmatpush.msra.mxu0 0.0
    %1660 = vmatpush.msra.mxu0 0.0
    %1661 = vmatpush.msra.mxu0 0.0
    %1662 = vmatpush.msra.mxu0 0.0
    %1663 = vmatpush.msra.mxu0 0.0
    %1664 = vmatpush.msra.mxu0 0.0
    %1665 = vmatpush.msra.mxu0 0.0
    %1666 = vmatpush.msra.mxu0 0.0
    %1667 = vmatpush.msra.mxu0 0.0
    %1668 = vmatpush.msra.mxu0 0.0
    %v1669 = vand.u32 %v613, 4294901760
    %v1670 = vsub.f32 %v613, %v1669
    %1671 = vmatpush.msra.mxu0 %v1670
    %v1672 = vand.u32 %v609, 4294901760
    %v1673 = vsub.f32 %v609, %v1672
    %1674 = vmatpush.msra.mxu0 %v1673
    %v1675 = vand.u32 %v616, 4294901760
    %v1676 = vsub.f32 %v616, %v1675
    %1677 = vmatmul.f32.gmra.mxu0 %v1676
    %v1678 = vpop.f32.mrf.mxu0
    %v1679 = vadd.f32 %v1649, %v1678
    %v1680 = vand.u32 %v619, 4294901760
    %v1681 = vsub.f32 %v619, %v1680
    %1682 = vmatmul.f32.gmra.mxu0 %v1681
    %v1683 = vpop.f32.mrf.mxu0
    %v1684 = vadd.f32 %v1653, %v1683
    %1685 = vdwg.mxu0
    %1686 = vmatpush.msra.mxu0 0.0
    %1687 = vmatpush.msra.mxu0 0.0
    %1688 = vmatpush.msra.mxu0 0.0
    %1689 = vmatpush.msra.mxu0 0.0
    %1690 = vmatpush.msra.mxu0 0.0
    %1691 = vmatpush.msra.mxu0 0.0
    %1692 = vmatpush.msra.mxu0 0.0
    %1693 = vmatpush.msra.mxu0 0.0
    %1694 = vmatpush.msra.mxu0 0.0
    %1695 = vmatpush.msra.mxu0 0.0
    %1696 = vmatpush.msra.mxu0 0.0
    %1697 = vmatpush.msra.mxu0 0.0
    %1698 = vmatpush.msra.mxu0 0.0
    %1699 = vmatpush.msra.mxu0 0.0
    %v1700 = vand.u32 %v613, 4294901760
    %1701 = vmatpush.msra.mxu0 %v1700
    %v1702 = vand.u32 %v609, 4294901760
    %1703 = vmatpush.msra.mxu0 %v1702
    %v1704 = vand.u32 %v616, 4294901760
    %v1705 = vsub.f32 %v616, %v1704
    %v1706 = vand.u32 %v1705, 4294901760
    %1707 = vmatmul.f32.gmra.mxu0 %v1706
    %v1708 = vpop.f32.mrf.mxu0
    %v1709 = vadd.f32 %v1679, %v1708
    %v1710 = vand.u32 %v619, 4294901760
    %v1711 = vsub.f32 %v619, %v1710
    %v1712 = vand.u32 %v1711, 4294901760
    %1713 = vmatmul.f32.gmra.mxu0 %v1712
    %v1714 = vpop.f32.mrf.mxu0
    %v1715 = vadd.f32 %v1684, %v1714
    %1716 = vdwg.mxu0
    %1717 = vmatpush.msra.mxu0 0.0
    %1718 = vmatpush.msra.mxu0 0.0
    %1719 = vmatpush.msra.mxu0 0.0
    %1720 = vmatpush.msra.mxu0 0.0
    %1721 = vmatpush.msra.mxu0 0.0
    %1722 = vmatpush.msra.mxu0 0.0
    %1723 = vmatpush.msra.mxu0 0.0
    %1724 = vmatpush.msra.mxu0 0.0
    %1725 = vmatpush.msra.mxu0 0.0
    %1726 = vmatpush.msra.mxu0 0.0
    %1727 = vmatpush.msra.mxu0 0.0
    %1728 = vmatpush.msra.mxu0 0.0
    %1729 = vmatpush.msra.mxu0 0.0
    %1730 = vmatpush.msra.mxu0 0.0
    %v1731 = vand.u32 %v613, 4294901760
    %v1732 = vsub.f32 %v613, %v1731
    %v1733 = vand.u32 %v1732, 4294901760
    %1734 = vmatpush.msra.mxu0 %v1733
    %v1735 = vand.u32 %v609, 4294901760
    %v1736 = vsub.f32 %v609, %v1735
    %v1737 = vand.u32 %v1736, 4294901760
    %1738 = vmatpush.msra.mxu0 %v1737
    %v1739 = vand.u32 %v616, 4294901760
    %1740 = vmatmul.f32.gmra.mxu0 %v1739
    %v1741 = vpop.f32.mrf.mxu0
    %v1742 = vadd.f32 %v1709, %v1741
    %v1743 = vand.u32 %v619, 4294901760
    %1744 = vmatmul.f32.gmra.mxu0 %v1743
    %v1745 = vpop.f32.mrf.mxu0
    %v1746 = vadd.f32 %v1715, %v1745
    %1747 = vdwg.mxu0
    %1748 = vmatpush.msra.mxu0 0.0
    %1749 = vmatpush.msra.mxu0 0.0
    %1750 = vmatpush.msra.mxu0 0.0
    %1751 = vmatpush.msra.mxu0 0.0
    %1752 = vmatpush.msra.mxu0 0.0
    %1753 = vmatpush.msra.mxu0 0.0
    %1754 = vmatpush.msra.mxu0 0.0
    %1755 = vmatpush.msra.mxu0 0.0
    %1756 = vmatpush.msra.mxu0 0.0
    %1757 = vmatpush.msra.mxu0 0.0
    %1758 = vmatpush.msra.mxu0 0.0
    %1759 = vmatpush.msra.mxu0 0.0
    %1760 = vmatpush.msra.mxu0 0.0
    %1761 = vmatpush.msra.mxu0 0.0
    %v1762 = vand.u32 %v613, 4294901760
    %1763 = vmatpush.msra.mxu0 %v1762
    %v1764 = vand.u32 %v609, 4294901760
    %1765 = vmatpush.msra.mxu0 %v1764
    %v1766 = vand.u32 %v616, 4294901760
    %1767 = vmatmul.f32.gmra.mxu0 %v1766
    %v1768 = vpop.f32.mrf.mxu0
    %v1769 = vadd.f32 %v1742, %v1768
    %v1770 = vand.u32 %v619, 4294901760
    %1771 = vmatmul.f32.gmra.mxu0 %v1770
    %v1772 = vpop.f32.mrf.mxu0
    %v1773 = vadd.f32 %v1746, %v1772
    %1774 = vdwg.mxu0
    %s1775 = scalar_lea.vmem [#allocation8], 80
    %1776 = vst.msk [vmem:[%s1775] sm:$0xff] %vm78, %v1769
    %1777 = vst.msk [vmem:[%s1775 + $0x8] sm:$0xff] %vm78, %v1773
    // Predicated region
    $region26: #{tpu_custom_call.1} parent=1 // pred_check
      _
    $region27: #{tpu_custom_call.1} parent=1 // pred_check_branch
      %1779 = sbr.rel (0) target = $region29
    $region28: #{tpu_custom_call.1} parent=1 // pred_region
      %1781 = vsyncadd [#allocation4], 0
      %s1782 = sshll.u32 [#allocation8], 4
      %s1783 = int_to_ptr.vmem [resolvable:$true] %s1782
      %s1784 = sshll.u32 %s3, 4
      %s1785 = int_to_ptr.hbm [resolvable:$true] %s1784
      %1790 = dma.vmem_to_hbm [thread:$0]  %s1783, 1536, %s1785, [#allocation4], 128, 128, 8
    $region29: #{tpu_custom_call.1} parent=1 // pred_fallthru
      _
    // Predicated region
    $region30: #{tpu_custom_call.1} parent=1 // pred_check
      _
    $region31: #{tpu_custom_call.1} parent=1 // pred_check_branch
      %1792 = sbr.rel (0) target = $region33
    $region32: #{tpu_custom_call.1} parent=1 // pred_region
      %1794 = dma.done [#allocation4], 1536
    $region33: #{tpu_custom_call.1} parent=1 // pred_fallthru
      _
    %1795 = vsyncpa [#allocation3], 1
    %1796 = vsyncpa [#allocation6], 1
    %1797 = vsyncpa [#allocation4], 1

</llo_original>
